<compile_context>
chip_gen: v5e
topology: v5e:2x2
jax: 0.10.0
libtpu: 0.0.40
codegen_flags: <defaults>
</compile_context>

<pallas_src>
import functools

import numpy as np
import jax
import jax.numpy as jnp
from jax.experimental import pallas as pl
from jax.experimental.pallas import tpu as pltpu


# ---------------------------------------------------------------------------
# Fused kernel
# ---------------------------------------------------------------------------
def _maxpool2_rows(y):
    """MaxPool1d(kernel=2, stride=2) over the row (length) axis of y: (Lout, C)."""
    lout, _ = y.shape
    lp = lout // 2
    r = jax.lax.broadcasted_iota(jnp.int32, (lp, lout), 0)
    c = jax.lax.broadcasted_iota(jnp.int32, (lp, lout), 1)
    sel_even = (c == 2 * r).astype(jnp.float32)       # picks rows 0, 2, 4, ...
    sel_odd = (c == 2 * r + 1).astype(jnp.float32)    # picks rows 1, 3, 5, ...
    return jnp.maximum(
        jnp.dot(sel_even, y, preferred_element_type=jnp.float32),
        jnp.dot(sel_odd, y, preferred_element_type=jnp.float32))


def _cnn_fused_kernel(x_ref,
                      cw0_ref, cs0_ref, cw1_ref, cs1_ref, cw2_ref, cs2_ref,
                      w1_ref, b1_ref, w2_ref, b2_ref,
                      o_ref, *, apply_sigmoid, single_output):
    x = x_ref[0]                                      # (L, E) for this batch element
    for w_ref, s_ref, relu in ((cw0_ref, cs0_ref, True),
                               (cw1_ref, cs1_ref, False),
                               (cw2_ref, cs2_ref, False)):
        l_cur, cin = x.shape
        kc, _ = w_ref.shape
        k = kc // cin
        lout = l_cur - k + 1
        # in-kernel im2col: (Lout, K*Cin) from K shifted row-slices of the VMEM slab
        cols = jnp.concatenate([x[j:j + lout, :] for j in range(k)], axis=1)
        # conv as one MXU matmul; BN scale folded into weights, conv bias + BN shift fused
        y = jnp.dot(cols, w_ref[...], preferred_element_type=jnp.float32) + s_ref[...]
        if relu:                                      # torch model: ReLU after block 1 only
            y = jnp.maximum(y, 0.0)
        x = _maxpool2_rows(y)                         # fused MaxPool1d(2)

    # Dense head.  x: (Lf, C3).  w1_ref: (Lf, C3, 512) pre-permuted so that
    # w1_ref[l, c, :] multiplies x[l, c] (matches torch's channel-major Flatten).
    h = b1_ref[...]                                   # (1, 512)
    for l in range(x.shape[0]):
        h = h + jnp.dot(x[l:l + 1, :], w1_ref[l], preferred_element_type=jnp.float32)
    if single_output:
        # Linear(512, 1): elementwise multiply + lane reduction (keeps MXU pipe free)
        y = jnp.sum(h * w2_ref[...], axis=1, keepdims=True) + b2_ref[...]
    else:
        y = jnp.dot(h, w2_ref[...], preferred_element_type=jnp.float32) + b2_ref[...]
    if apply_sigmoid:
        y = jax.nn.sigmoid(y)
    o_ref[0] = y


# ---------------------------------------------------------------------------
# Wrapper
# ---------------------------------------------------------------------------
def cnn_forward(p, tokens):
    x = p["emb"][tokens]                              # (B, L, E) — embedding gather stays as glue
    B, L, E = x.shape
    c0, c1, c2 = p["convs"]
    H = p["b1"].shape[0]
    O = p["b2"].shape[0]
    single = (O == 1)
    w2k = p["w2"].T if single else p["w2"]            # (1, 512) for the binary head
    b1 = p["b1"].reshape(1, H)
    b2 = p["b2"].reshape(1, O)

    def rep(arr):                                     # grid-invariant (replicated) operand
        n = arr.ndim
        return pl.BlockSpec(arr.shape, lambda b: (0,) * n)

    out = pl.pallas_call(
        functools.partial(_cnn_fused_kernel,
                          apply_sigmoid=not p["is_multiclass"],
                          single_output=single),
        out_shape=jax.ShapeDtypeStruct((B, 1, O), jnp.float32),
        grid=(B,),
        in_specs=[
            pl.BlockSpec((1, L, E), lambda b: (b, 0, 0)),
            rep(c0["w"]), rep(c0["shift"]),
            rep(c1["w"]), rep(c1["shift"]),
            rep(c2["w"]), rep(c2["shift"]),
            rep(p["w1r"]), rep(b1),
            rep(w2k), rep(b2),
        ],
        out_specs=pl.BlockSpec((1, 1, O), lambda b: (b, 0, 0)),
        compiler_params=pltpu.CompilerParams(dimension_semantics=("parallel",)),
    )(x, c0["w"], c0["shift"], c1["w"], c1["shift"], c2["w"], c2["shift"],
      p["w1r"], b1, w2k, b2)
    return out.reshape(B, O)


# ---------------------------------------------------------------------------
# Parameter init (mirrors the torch module's shapes; BN folded for the kernel)
# ---------------------------------------------------------------------------
def init_params(key, vocab_size, embedding_dim, input_len, number_of_classes):
    ks = jax.random.split(key, 12)
    eps = 1e-5
    p = {}
    p["emb"] = jax.random.normal(ks[0], (vocab_size, embedding_dim), jnp.float32)

    conv_cfg = [(embedding_dim, 16, 8), (16, 8, 8), (8, 4, 8)]
    p["convs"], p["convs_raw"] = [], []
    L = input_len
    for i, (cin, cout, k) in enumerate(conv_cfg):
        w = jax.random.normal(ks[1 + i], (cout, cin, k), jnp.float32) / np.sqrt(cin * k)
        b = jax.random.normal(ks[4 + i], (cout,), jnp.float32) * 0.1
        # TODO(synk): BatchNorm is implemented in inference (running-stats) form; a torch
        # module in train() mode would use per-batch statistics instead.
        gamma = jnp.ones((cout,), jnp.float32)
        beta = jnp.zeros((cout,), jnp.float32)
        mean = jnp.zeros((cout,), jnp.float32)
        var = jnp.ones((cout,), jnp.float32)
        scale = gamma / jnp.sqrt(var + eps)
        bn_shift = beta - mean * scale
        # fold conv bias + BN affine into the (K*Cin, Cout) matmul weight / one shift
        w2d = jnp.transpose(w, (2, 1, 0)).reshape(k * cin, cout) * scale[None, :]
        p["convs"].append(dict(w=w2d, shift=(b * scale + bn_shift).reshape(1, cout)))
        p["convs_raw"].append(dict(w=w, b=b, gamma=gamma, beta=beta, mean=mean, var=var))
        L = (L - k + 1) // 2                          # valid conv then MaxPool1d(2)

    c3 = conv_cfg[-1][1]
    flat = c3 * L                                     # == CNN.count_flatten_size(input_len)
    out_neurons = 1 if number_of_classes == 2 else number_of_classes
    p["w1"] = jax.random.normal(ks[7], (flat, 512), jnp.float32) / np.sqrt(flat)
    p["b1"] = jax.random.normal(ks[8], (512,), jnp.float32) * 0.1
    p["w2"] = jax.random.normal(ks[9], (512, out_neurons), jnp.float32) / np.sqrt(512)
    p["b2"] = jax.random.normal(ks[10], (out_neurons,), jnp.float32) * 0.1
    # w1 rows reordered from torch's channel-major flatten index (c*Lf + l) to (l, c)
    p["w1r"] = p["w1"].reshape(c3, L, 512).transpose(1, 0, 2)
    p["is_multiclass"] = (number_of_classes != 2)
    return p


# ---------------------------------------------------------------------------
# Independent pure-JAX reference (unfolded params, lax.conv, matches torch math)
# ---------------------------------------------------------------------------
def cnn_forward_ref(p, tokens):
    eps = 1e-5
    x = jnp.transpose(p["emb"][tokens], (0, 2, 1))    # (B, C, L) like torch NCL
    for i, c in enumerate(p["convs_raw"]):
        y = jax.lax.conv_general_dilated(
            x, c["w"], window_strides=(1,), padding="VALID",
            dimension_numbers=("NCH", "OIH", "NCH"))
        y = y + c["b"][None, :, None]
        s = (c["gamma"] / jnp.sqrt(c["var"] + eps))[None, :, None]
        y = (y - c["mean"][None, :, None]) * s + c["beta"][None, :, None]
        if i == 0:
            y = jnp.maximum(y, 0.0)
        B_, C_, L_ = y.shape
        lp = L_ // 2
        x = jnp.max(y[:, :, :2 * lp].reshape(B_, C_, lp, 2), axis=-1)
    B_, C_, Lf = x.shape
    flat = x.reshape(B_, C_ * Lf)                     # torch Flatten (channel-major)
    h = flat @ p["w1"] + p["b1"]
    y = h @ p["w2"] + p["b2"]
    if not p["is_multiclass"]:
        y = jax.nn.sigmoid(y)
    return y


# ---------------------------------------------------------------------------
if __name__ == "__main__":
    B, L = 2, 64
    vocab_size, embedding_dim = 50, 32
    number_of_classes = 2                             # -> 1 output neuron + Sigmoid

    root = jax.random.PRNGKey(0)
    k_params, k_tokens = jax.random.split(root)

    params = init_params(k_params, vocab_size, embedding_dim, L, number_of_classes)
    tokens = jax.random.randint(k_tokens, (B, L), 0, vocab_size, dtype=jnp.int32)

    out = jax.block_until_ready(cnn_forward(params, tokens))
    ref = cnn_forward_ref(params, tokens)

    assert out.shape == (B, 1), out.shape
    np.testing.assert_allclose(np.asarray(out), np.asarray(ref), rtol=1e-2, atol=1e-2)

    print("KERNEL_OK")
</pallas_src>

<mosaic_0001>
module attributes {stable_mosaic.version = 11 : i64} {
  func.func @_cnn_fused_kernel(%arg0: i32, %arg1: memref<1x64x32xf32, #tpu.memory_space<vmem>>, %arg2: memref<256x16xf32, #tpu.memory_space<vmem>>, %arg3: memref<1x16xf32, #tpu.memory_space<vmem>>, %arg4: memref<128x8xf32, #tpu.memory_space<vmem>>, %arg5: memref<1x8xf32, #tpu.memory_space<vmem>>, %arg6: memref<64x4xf32, #tpu.memory_space<vmem>>, %arg7: memref<1x4xf32, #tpu.memory_space<vmem>>, %arg8: memref<1x4x512xf32, #tpu.memory_space<vmem>>, %arg9: memref<1x512xf32, #tpu.memory_space<vmem>>, %arg10: memref<1x512xf32, #tpu.memory_space<vmem>>, %arg11: memref<1x1xf32, #tpu.memory_space<vmem>>, %arg12: memref<1x1x1xf32, #tpu.memory_space<vmem>>) attributes {dimension_semantics = [#tpu.dimension_semantics<parallel>], iteration_bounds = array<i64: 2>, scalar_prefetch = 0 : i64, scratch_operands = 0 : i64, tpu.core_type = #tpu.core_type<tc>, window_params = [{transform_indices = @transform_0, window_bounds = array<i64: 1, 64, 32>}, {pipeline_mode = #tpu.pipeline_mode<synchronous>, transform_indices = @transform_1, window_bounds = array<i64: 256, 16>}, {pipeline_mode = #tpu.pipeline_mode<synchronous>, transform_indices = @transform_2, window_bounds = array<i64: 1, 16>}, {pipeline_mode = #tpu.pipeline_mode<synchronous>, transform_indices = @transform_3, window_bounds = array<i64: 128, 8>}, {pipeline_mode = #tpu.pipeline_mode<synchronous>, transform_indices = @transform_4, window_bounds = array<i64: 1, 8>}, {pipeline_mode = #tpu.pipeline_mode<synchronous>, transform_indices = @transform_5, window_bounds = array<i64: 64, 4>}, {pipeline_mode = #tpu.pipeline_mode<synchronous>, transform_indices = @transform_6, window_bounds = array<i64: 1, 4>}, {pipeline_mode = #tpu.pipeline_mode<synchronous>, transform_indices = @transform_7, window_bounds = array<i64: 1, 4, 512>}, {pipeline_mode = #tpu.pipeline_mode<synchronous>, transform_indices = @transform_8, window_bounds = array<i64: 1, 512>}, {pipeline_mode = #tpu.pipeline_mode<synchronous>, transform_indices = @transform_9, window_bounds = array<i64: 1, 512>}, {pipeline_mode = #tpu.pipeline_mode<synchronous>, transform_indices = @transform_10, window_bounds = array<i64: 1, 1>}, {transform_indices = @transform_11, window_bounds = array<i64: 1, 1, 1>}]} {
    %c0 = arith.constant 0 : index
    %c0_0 = arith.constant 0 : index
    %c0_1 = arith.constant 0 : index
    %0 = vector.load %arg1[%c0, %c0_0, %c0_1] : memref<1x64x32xf32, #tpu.memory_space<vmem>>, vector<1x64x32xf32>
    %1 = vector.shape_cast %0 : vector<1x64x32xf32> to vector<64x32xf32>
    %2 = vector.extract_strided_slice %1 {offsets = [0, 0], sizes = [57, 32], strides = [1, 1]} : vector<64x32xf32> to vector<57x32xf32>
    %3 = vector.extract_strided_slice %1 {offsets = [1, 0], sizes = [57, 32], strides = [1, 1]} : vector<64x32xf32> to vector<57x32xf32>
    %4 = vector.extract_strided_slice %1 {offsets = [2, 0], sizes = [57, 32], strides = [1, 1]} : vector<64x32xf32> to vector<57x32xf32>
    %5 = vector.extract_strided_slice %1 {offsets = [3, 0], sizes = [57, 32], strides = [1, 1]} : vector<64x32xf32> to vector<57x32xf32>
    %6 = vector.extract_strided_slice %1 {offsets = [4, 0], sizes = [57, 32], strides = [1, 1]} : vector<64x32xf32> to vector<57x32xf32>
    %7 = vector.extract_strided_slice %1 {offsets = [5, 0], sizes = [57, 32], strides = [1, 1]} : vector<64x32xf32> to vector<57x32xf32>
    %8 = vector.extract_strided_slice %1 {offsets = [6, 0], sizes = [57, 32], strides = [1, 1]} : vector<64x32xf32> to vector<57x32xf32>
    %9 = vector.extract_strided_slice %1 {offsets = [7, 0], sizes = [57, 32], strides = [1, 1]} : vector<64x32xf32> to vector<57x32xf32>
    %10 = tpu.concatenate %2, %3, %4, %5, %6, %7, %8, %9 in 1 : vector<57x32xf32>, vector<57x32xf32>, vector<57x32xf32>, vector<57x32xf32>, vector<57x32xf32>, vector<57x32xf32>, vector<57x32xf32>, vector<57x32xf32> -> vector<57x256xf32>
    %c0_2 = arith.constant 0 : index
    %c0_3 = arith.constant 0 : index
    %11 = vector.load %arg2[%c0_2, %c0_3] : memref<256x16xf32, #tpu.memory_space<vmem>>, vector<256x16xf32>
    %cst = arith.constant dense<0.000000e+00> : vector<57x16xf32>
    %12 = tpu.matmul %10, %11, %cst {dimension_numbers = #tpu.dot_dimension_numbers<[1], [0], [0], [1], [0, 0, 1, 1], [], []>} : vector<57x256xf32>, vector<256x16xf32>, vector<57x16xf32> -> vector<57x16xf32>
    %c0_4 = arith.constant 0 : index
    %c0_5 = arith.constant 0 : index
    %13 = vector.load %arg3[%c0_4, %c0_5] : memref<1x16xf32, #tpu.memory_space<vmem>>, vector<1x16xf32>
    %14 = vector.broadcast %13 : vector<1x16xf32> to vector<57x16xf32>
    %15 = arith.addf %12, %14 : vector<57x16xf32>
    %cst_6 = arith.constant 0.000000e+00 : f32
    %16 = vector.broadcast %cst_6 : f32 to vector<57x16xf32>
    %17 = arith.maximumf %15, %16 : vector<57x16xf32>
    %18 = tpu.iota {dimensions = array<i32: 0>} : vector<28x57xi32>
    %19 = tpu.iota {dimensions = array<i32: 1>} : vector<28x57xi32>
    %c2_i32 = arith.constant 2 : i32
    %20 = vector.broadcast %c2_i32 : i32 to vector<28x57xi32>
    %21 = arith.muli %20, %18 : vector<28x57xi32>
    %22 = arith.cmpi eq, %19, %21 : vector<28x57xi32>
    %23 = arith.extui %22 : vector<28x57xi1> to vector<28x57xi32>
    %24 = arith.sitofp %23 : vector<28x57xi32> to vector<28x57xf32>
    %c2_i32_7 = arith.constant 2 : i32
    %25 = vector.broadcast %c2_i32_7 : i32 to vector<28x57xi32>
    %26 = arith.muli %25, %18 : vector<28x57xi32>
    %c1_i32 = arith.constant 1 : i32
    %27 = vector.broadcast %c1_i32 : i32 to vector<28x57xi32>
    %28 = arith.addi %26, %27 : vector<28x57xi32>
    %29 = arith.cmpi eq, %19, %28 : vector<28x57xi32>
    %30 = arith.extui %29 : vector<28x57xi1> to vector<28x57xi32>
    %31 = arith.sitofp %30 : vector<28x57xi32> to vector<28x57xf32>
    %cst_8 = arith.constant dense<0.000000e+00> : vector<28x16xf32>
    %32 = tpu.matmul %24, %17, %cst_8 {dimension_numbers = #tpu.dot_dimension_numbers<[1], [0], [0], [1], [0, 0, 1, 1], [], []>} : vector<28x57xf32>, vector<57x16xf32>, vector<28x16xf32> -> vector<28x16xf32>
    %cst_9 = arith.constant dense<0.000000e+00> : vector<28x16xf32>
    %33 = tpu.matmul %31, %17, %cst_9 {dimension_numbers = #tpu.dot_dimension_numbers<[1], [0], [0], [1], [0, 0, 1, 1], [], []>} : vector<28x57xf32>, vector<57x16xf32>, vector<28x16xf32> -> vector<28x16xf32>
    %34 = arith.maximumf %32, %33 : vector<28x16xf32>
    %35 = vector.extract_strided_slice %34 {offsets = [0, 0], sizes = [21, 16], strides = [1, 1]} : vector<28x16xf32> to vector<21x16xf32>
    %36 = vector.extract_strided_slice %34 {offsets = [1, 0], sizes = [21, 16], strides = [1, 1]} : vector<28x16xf32> to vector<21x16xf32>
    %37 = vector.extract_strided_slice %34 {offsets = [2, 0], sizes = [21, 16], strides = [1, 1]} : vector<28x16xf32> to vector<21x16xf32>
    %38 = vector.extract_strided_slice %34 {offsets = [3, 0], sizes = [21, 16], strides = [1, 1]} : vector<28x16xf32> to vector<21x16xf32>
    %39 = vector.extract_strided_slice %34 {offsets = [4, 0], sizes = [21, 16], strides = [1, 1]} : vector<28x16xf32> to vector<21x16xf32>
    %40 = vector.extract_strided_slice %34 {offsets = [5, 0], sizes = [21, 16], strides = [1, 1]} : vector<28x16xf32> to vector<21x16xf32>
    %41 = vector.extract_strided_slice %34 {offsets = [6, 0], sizes = [21, 16], strides = [1, 1]} : vector<28x16xf32> to vector<21x16xf32>
    %42 = vector.extract_strided_slice %34 {offsets = [7, 0], sizes = [21, 16], strides = [1, 1]} : vector<28x16xf32> to vector<21x16xf32>
    %43 = tpu.concatenate %35, %36, %37, %38, %39, %40, %41, %42 in 1 : vector<21x16xf32>, vector<21x16xf32>, vector<21x16xf32>, vector<21x16xf32>, vector<21x16xf32>, vector<21x16xf32>, vector<21x16xf32>, vector<21x16xf32> -> vector<21x128xf32>
    %c0_10 = arith.constant 0 : index
    %c0_11 = arith.constant 0 : index
    %44 = vector.load %arg4[%c0_10, %c0_11] : memref<128x8xf32, #tpu.memory_space<vmem>>, vector<128x8xf32>
    %cst_12 = arith.constant dense<0.000000e+00> : vector<21x8xf32>
    %45 = tpu.matmul %43, %44, %cst_12 {dimension_numbers = #tpu.dot_dimension_numbers<[1], [0], [0], [1], [0, 0, 1, 1], [], []>} : vector<21x128xf32>, vector<128x8xf32>, vector<21x8xf32> -> vector<21x8xf32>
    %c0_13 = arith.constant 0 : index
    %c0_14 = arith.constant 0 : index
    %46 = vector.load %arg5[%c0_13, %c0_14] : memref<1x8xf32, #tpu.memory_space<vmem>>, vector<1x8xf32>
    %47 = vector.broadcast %46 : vector<1x8xf32> to vector<21x8xf32>
    %48 = arith.addf %45, %47 : vector<21x8xf32>
    %49 = tpu.iota {dimensions = array<i32: 0>} : vector<10x21xi32>
    %50 = tpu.iota {dimensions = array<i32: 1>} : vector<10x21xi32>
    %c2_i32_15 = arith.constant 2 : i32
    %51 = vector.broadcast %c2_i32_15 : i32 to vector<10x21xi32>
    %52 = arith.muli %51, %49 : vector<10x21xi32>
    %53 = arith.cmpi eq, %50, %52 : vector<10x21xi32>
    %54 = arith.extui %53 : vector<10x21xi1> to vector<10x21xi32>
    %55 = arith.sitofp %54 : vector<10x21xi32> to vector<10x21xf32>
    %c2_i32_16 = arith.constant 2 : i32
    %56 = vector.broadcast %c2_i32_16 : i32 to vector<10x21xi32>
    %57 = arith.muli %56, %49 : vector<10x21xi32>
    %c1_i32_17 = arith.constant 1 : i32
    %58 = vector.broadcast %c1_i32_17 : i32 to vector<10x21xi32>
    %59 = arith.addi %57, %58 : vector<10x21xi32>
    %60 = arith.cmpi eq, %50, %59 : vector<10x21xi32>
    %61 = arith.extui %60 : vector<10x21xi1> to vector<10x21xi32>
    %62 = arith.sitofp %61 : vector<10x21xi32> to vector<10x21xf32>
    %cst_18 = arith.constant dense<0.000000e+00> : vector<10x8xf32>
    %63 = tpu.matmul %55, %48, %cst_18 {dimension_numbers = #tpu.dot_dimension_numbers<[1], [0], [0], [1], [0, 0, 1, 1], [], []>} : vector<10x21xf32>, vector<21x8xf32>, vector<10x8xf32> -> vector<10x8xf32>
    %cst_19 = arith.constant dense<0.000000e+00> : vector<10x8xf32>
    %64 = tpu.matmul %62, %48, %cst_19 {dimension_numbers = #tpu.dot_dimension_numbers<[1], [0], [0], [1], [0, 0, 1, 1], [], []>} : vector<10x21xf32>, vector<21x8xf32>, vector<10x8xf32> -> vector<10x8xf32>
    %65 = arith.maximumf %63, %64 : vector<10x8xf32>
    %66 = vector.extract_strided_slice %65 {offsets = [0, 0], sizes = [3, 8], strides = [1, 1]} : vector<10x8xf32> to vector<3x8xf32>
    %67 = vector.extract_strided_slice %65 {offsets = [1, 0], sizes = [3, 8], strides = [1, 1]} : vector<10x8xf32> to vector<3x8xf32>
    %68 = vector.extract_strided_slice %65 {offsets = [2, 0], sizes = [3, 8], strides = [1, 1]} : vector<10x8xf32> to vector<3x8xf32>
    %69 = vector.extract_strided_slice %65 {offsets = [3, 0], sizes = [3, 8], strides = [1, 1]} : vector<10x8xf32> to vector<3x8xf32>
    %70 = vector.extract_strided_slice %65 {offsets = [4, 0], sizes = [3, 8], strides = [1, 1]} : vector<10x8xf32> to vector<3x8xf32>
    %71 = vector.extract_strided_slice %65 {offsets = [5, 0], sizes = [3, 8], strides = [1, 1]} : vector<10x8xf32> to vector<3x8xf32>
    %72 = vector.extract_strided_slice %65 {offsets = [6, 0], sizes = [3, 8], strides = [1, 1]} : vector<10x8xf32> to vector<3x8xf32>
    %73 = vector.extract_strided_slice %65 {offsets = [7, 0], sizes = [3, 8], strides = [1, 1]} : vector<10x8xf32> to vector<3x8xf32>
    %74 = tpu.concatenate %66, %67, %68, %69, %70, %71, %72, %73 in 1 : vector<3x8xf32>, vector<3x8xf32>, vector<3x8xf32>, vector<3x8xf32>, vector<3x8xf32>, vector<3x8xf32>, vector<3x8xf32>, vector<3x8xf32> -> vector<3x64xf32>
    %c0_20 = arith.constant 0 : index
    %c0_21 = arith.constant 0 : index
    %75 = vector.load %arg6[%c0_20, %c0_21] : memref<64x4xf32, #tpu.memory_space<vmem>>, vector<64x4xf32>
    %cst_22 = arith.constant dense<0.000000e+00> : vector<3x4xf32>
    %76 = tpu.matmul %74, %75, %cst_22 {dimension_numbers = #tpu.dot_dimension_numbers<[1], [0], [0], [1], [0, 0, 1, 1], [], []>} : vector<3x64xf32>, vector<64x4xf32>, vector<3x4xf32> -> vector<3x4xf32>
    %c0_23 = arith.constant 0 : index
    %c0_24 = arith.constant 0 : index
    %77 = vector.load %arg7[%c0_23, %c0_24] : memref<1x4xf32, #tpu.memory_space<vmem>>, vector<1x4xf32>
    %78 = vector.broadcast %77 : vector<1x4xf32> to vector<3x4xf32>
    %79 = arith.addf %76, %78 : vector<3x4xf32>
    %80 = tpu.iota {dimensions = array<i32: 0>} : vector<1x3xi32>
    %81 = tpu.iota {dimensions = array<i32: 1>} : vector<1x3xi32>
    %c2_i32_25 = arith.constant 2 : i32
    %82 = vector.broadcast %c2_i32_25 : i32 to vector<1x3xi32>
    %83 = arith.muli %82, %80 : vector<1x3xi32>
    %84 = arith.cmpi eq, %81, %83 : vector<1x3xi32>
    %85 = arith.extui %84 : vector<1x3xi1> to vector<1x3xi32>
    %86 = arith.sitofp %85 : vector<1x3xi32> to vector<1x3xf32>
    %c2_i32_26 = arith.constant 2 : i32
    %87 = vector.broadcast %c2_i32_26 : i32 to vector<1x3xi32>
    %88 = arith.muli %87, %80 : vector<1x3xi32>
    %c1_i32_27 = arith.constant 1 : i32
    %89 = vector.broadcast %c1_i32_27 : i32 to vector<1x3xi32>
    %90 = arith.addi %88, %89 : vector<1x3xi32>
    %91 = arith.cmpi eq, %81, %90 : vector<1x3xi32>
    %92 = arith.extui %91 : vector<1x3xi1> to vector<1x3xi32>
    %93 = arith.sitofp %92 : vector<1x3xi32> to vector<1x3xf32>
    %cst_28 = arith.constant dense<0.000000e+00> : vector<1x4xf32>
    %94 = tpu.matmul %86, %79, %cst_28 {dimension_numbers = #tpu.dot_dimension_numbers<[1], [0], [0], [1], [0, 0, 1, 1], [], []>} : vector<1x3xf32>, vector<3x4xf32>, vector<1x4xf32> -> vector<1x4xf32>
    %cst_29 = arith.constant dense<0.000000e+00> : vector<1x4xf32>
    %95 = tpu.matmul %93, %79, %cst_29 {dimension_numbers = #tpu.dot_dimension_numbers<[1], [0], [0], [1], [0, 0, 1, 1], [], []>} : vector<1x3xf32>, vector<3x4xf32>, vector<1x4xf32> -> vector<1x4xf32>
    %96 = arith.maximumf %94, %95 : vector<1x4xf32>
    %c0_30 = arith.constant 0 : index
    %c0_31 = arith.constant 0 : index
    %97 = vector.load %arg9[%c0_30, %c0_31] : memref<1x512xf32, #tpu.memory_space<vmem>>, vector<1x512xf32>
    %c0_32 = arith.constant 0 : index
    %c0_33 = arith.constant 0 : index
    %c0_34 = arith.constant 0 : index
    %98 = vector.load %arg8[%c0_32, %c0_33, %c0_34] : memref<1x4x512xf32, #tpu.memory_space<vmem>>, vector<1x4x512xf32>
    %99 = vector.shape_cast %98 : vector<1x4x512xf32> to vector<4x512xf32>
    %cst_35 = arith.constant dense<0.000000e+00> : vector<1x512xf32>
    %100 = tpu.matmul %96, %99, %cst_35 {dimension_numbers = #tpu.dot_dimension_numbers<[1], [0], [0], [1], [0, 0, 1, 1], [], []>} : vector<1x4xf32>, vector<4x512xf32>, vector<1x512xf32> -> vector<1x512xf32>
    %101 = arith.addf %97, %100 : vector<1x512xf32>
    %c0_36 = arith.constant 0 : index
    %c0_37 = arith.constant 0 : index
    %102 = vector.load %arg10[%c0_36, %c0_37] : memref<1x512xf32, #tpu.memory_space<vmem>>, vector<1x512xf32>
    %103 = arith.mulf %101, %102 : vector<1x512xf32>
    %cst_38 = arith.constant dense<0.000000e+00> : vector<1xf32>
    %104 = vector.multi_reduction <add>, %103, %cst_38 [1] : vector<1x512xf32> to vector<1xf32>
    %105 = vector.shape_cast %104 : vector<1xf32> to vector<1x1xf32>
    %c0_39 = arith.constant 0 : index
    %c0_40 = arith.constant 0 : index
    %106 = vector.load %arg11[%c0_39, %c0_40] : memref<1x1xf32, #tpu.memory_space<vmem>>, vector<1x1xf32>
    %107 = arith.addf %105, %106 : vector<1x1xf32>
    %108 = arith.negf %107 : vector<1x1xf32>
    %109 = math.exp %108 : vector<1x1xf32>
    %cst_41 = arith.constant 1.000000e+00 : f32
    %110 = vector.broadcast %cst_41 : f32 to vector<1x1xf32>
    %111 = arith.addf %110, %109 : vector<1x1xf32>
    %112 = arith.divf %110, %111 : vector<1x1xf32>
    %c0_42 = arith.constant 0 : index
    %c0_43 = arith.constant 0 : index
    %c0_44 = arith.constant 0 : index
    %113 = vector.load %arg12[%c0_42, %c0_43, %c0_44] : memref<1x1x1xf32, #tpu.memory_space<vmem>>, vector<1x1x1xf32>
    %114 = vector.shape_cast %113 : vector<1x1x1xf32> to vector<1x1xf32>
    %115 = vector.shape_cast %112 : vector<1x1xf32> to vector<1x1x1xf32>
    tpu.vector_store %arg12[%c0_42, %c0_43, %c0_44], %115 {strides = array<i32>} : memref<1x1x1xf32, #tpu.memory_space<vmem>>, vector<1x1x1xf32>,
    return
  }
  func.func @transform_0(%arg0: i32) -> (i32, i32, i32) {
    %c0_i32 = arith.constant 0 : i32
    %c0_i32_0 = arith.constant 0 : i32
    %c0_i32_1 = arith.constant 0 : i32
    return %arg0, %c0_i32, %c0_i32_0 : i32, i32, i32
  }
  func.func @transform_1(%arg0: i32) -> (i32, i32) {
    %c0_i32 = arith.constant 0 : i32
    %c0_i32_0 = arith.constant 0 : i32
    %c0_i32_1 = arith.constant 0 : i32
    return %c0_i32, %c0_i32_0 : i32, i32
  }
  func.func @transform_2(%arg0: i32) -> (i32, i32) {
    %c0_i32 = arith.constant 0 : i32
    %c0_i32_0 = arith.constant 0 : i32
    %c0_i32_1 = arith.constant 0 : i32
    return %c0_i32, %c0_i32_0 : i32, i32
  }
  func.func @transform_3(%arg0: i32) -> (i32, i32) {
    %c0_i32 = arith.constant 0 : i32
    %c0_i32_0 = arith.constant 0 : i32
    %c0_i32_1 = arith.constant 0 : i32
    return %c0_i32, %c0_i32_0 : i32, i32
  }
  func.func @transform_4(%arg0: i32) -> (i32, i32) {
    %c0_i32 = arith.constant 0 : i32
    %c0_i32_0 = arith.constant 0 : i32
    %c0_i32_1 = arith.constant 0 : i32
    return %c0_i32, %c0_i32_0 : i32, i32
  }
  func.func @transform_5(%arg0: i32) -> (i32, i32) {
    %c0_i32 = arith.constant 0 : i32
    %c0_i32_0 = arith.constant 0 : i32
    %c0_i32_1 = arith.constant 0 : i32
    return %c0_i32, %c0_i32_0 : i32, i32
  }
  func.func @transform_6(%arg0: i32) -> (i32, i32) {
    %c0_i32 = arith.constant 0 : i32
    %c0_i32_0 = arith.constant 0 : i32
    %c0_i32_1 = arith.constant 0 : i32
    return %c0_i32, %c0_i32_0 : i32, i32
  }
  func.func @transform_7(%arg0: i32) -> (i32, i32, i32) {
    %c0_i32 = arith.constant 0 : i32
    %c0_i32_0 = arith.constant 0 : i32
    %c0_i32_1 = arith.constant 0 : i32
    %c0_i32_2 = arith.constant 0 : i32
    return %c0_i32, %c0_i32_0, %c0_i32_1 : i32, i32, i32
  }
  func.func @transform_8(%arg0: i32) -> (i32, i32) {
    %c0_i32 = arith.constant 0 : i32
    %c0_i32_0 = arith.constant 0 : i32
    %c0_i32_1 = arith.constant 0 : i32
    return %c0_i32, %c0_i32_0 : i32, i32
  }
  func.func @transform_9(%arg0: i32) -> (i32, i32) {
    %c0_i32 = arith.constant 0 : i32
    %c0_i32_0 = arith.constant 0 : i32
    %c0_i32_1 = arith.constant 0 : i32
    return %c0_i32, %c0_i32_0 : i32, i32
  }
  func.func @transform_10(%arg0: i32) -> (i32, i32) {
    %c0_i32 = arith.constant 0 : i32
    %c0_i32_0 = arith.constant 0 : i32
    %c0_i32_1 = arith.constant 0 : i32
    return %c0_i32, %c0_i32_0 : i32, i32
  }
  func.func @transform_11(%arg0: i32) -> (i32, i32, i32) {
    %c0_i32 = arith.constant 0 : i32
    %c0_i32_0 = arith.constant 0 : i32
    %c0_i32_1 = arith.constant 0 : i32
    return %arg0, %c0_i32, %c0_i32_0 : i32, i32, i32
  }
}

</mosaic_0001>

<llo_original>
// kernel: tpu_custom_call.1
$region0: #{tpu_custom_call.1}
  #allocation0 [shape = 'u32[]', space=smem, size = 0x4, offset = 0x4, fixed_abs, tag = 'smem constant byte address 0x4 - core index']
  #allocation1 [shape = 'u32[72,128]{1,0:T(1,128)}', space=vmem, size = 0x9000, scoped, tag = 'internal scratch']
  #allocation2 [shape = 'f32[1,1]{1,0:T(1,128)S(1)}', space=vmem, size = 0x200, scoped, tag = 'scoped memory for tpu_custom_call.1']
  %s0 = inlined_call_operand.vmem [shape: f32[2,64,32], index: 0, kind: input, shape index: {}]
  %s1 = inlined_call_operand.vmem [shape: f32[256,16], index: 1, kind: input, shape index: {}]
  %s2 = inlined_call_operand.vmem [shape: f32[1,16], index: 2, kind: input, shape index: {}]
  %s3 = inlined_call_operand.vmem [shape: f32[128,8], index: 3, kind: input, shape index: {}]
  %s4 = inlined_call_operand.vmem [shape: f32[1,8], index: 4, kind: input, shape index: {}]
  %s5 = inlined_call_operand.vmem [shape: f32[64,4], index: 5, kind: input, shape index: {}]
  %s6 = inlined_call_operand.vmem [shape: f32[1,4], index: 6, kind: input, shape index: {}]
  %s7 = inlined_call_operand.vmem [shape: f32[1,4,512], index: 7, kind: input, shape index: {}]
  %s8 = inlined_call_operand.vmem [shape: f32[1,512], index: 8, kind: input, shape index: {}]
  %s9 = inlined_call_operand.vmem [shape: f32[1,512], index: 9, kind: input, shape index: {}]
  %s10 = inlined_call_operand.<no memory space> [shape: f32[1,1], index: 10, kind: input, shape index: {}]
  %s11 = inlined_call_operand.vmem [shape: f32[2,1,1], index: 11, kind: output, shape index: {}]
  %s12 = sld [smem:[#allocation0]]
  $region77: #{tpu_custom_call.1} parent=0
    _
  %s14 = ssub.s32 1, %s12
  %s15 = scalar_select 0, %s14, %s12
  %v16 = vstv %s10
  %17 = vst [vmem:[#allocation2] sm:$0x1] %v16
  loop: start=0, step=1, limit=4
  $region2: #{tpu_custom_call.1} parent=0 // loop_pre_header
    _
  $region3: #{tpu_custom_call.1} parent=0 // loop_header
    %s19 = sphi 0, %s23
    %p20 = scmp.ge.s32.totalorder %s19, 4
    %s29 = sphi 0, %s31
    %s32 = sphi 0, %s29
    %s33 = sphi 0, %s32
    %s49 = sphi 0, %s33
    %s53 = sphi 0, %s53
    %s55 = sphi 0, %s53
    %s56 = sphi 0, %s55
    %s70 = sphi 0, %s56
    %s74 = sphi 0, %s74
    %s76 = sphi 0, %s74
    %s77 = sphi 0, %s76
    %s91 = sphi 0, %s77
    %s95 = sphi 0, %s95
    %s97 = sphi 0, %s95
    %s98 = sphi 0, %s97
    %s112 = sphi 0, %s98
    %s116 = sphi 0, %s116
    %s118 = sphi 0, %s116
    %s119 = sphi 0, %s118
    %s133 = sphi 0, %s119
    %s137 = sphi 0, %s137
    %s139 = sphi 0, %s137
    %s140 = sphi 0, %s139
    %s154 = sphi 0, %s140
    %s158 = sphi 0, %s158
    %s160 = sphi 0, %s158
    %s161 = sphi 0, %s160
    %s175 = sphi 0, %s161
    %s179 = sphi 0, %s179
    %s181 = sphi 0, %s179
    %s182 = sphi 0, %s181
    %s196 = sphi 0, %s182
    %s200 = sphi 0, %s200
    %s202 = sphi 0, %s200
    %s203 = sphi 0, %s202
    %s217 = sphi 0, %s203
    %s221 = sphi 0, %s221
    %s223 = sphi 0, %s221
    %s224 = sphi 0, %s223
    %s238 = sphi 0, %s224
    %s242 = sphi 0, %s242
    %s244 = sphi 0, %s242
    %s245 = sphi 0, %s244
    %s259 = sphi 0, %s245
    %s265 = sphi 0, %s267
    %s268 = sphi 0, %s265
    %s269 = sphi 0, %s268
    %s285 = sphi 0, %s269
  $region4: #{tpu_custom_call.1} parent=0 // loop_header_branch
    %22 = sbr.rel (%p20) target = $region8
  $region5: #{tpu_custom_call.1} parent=0 // loop_body
    %s24 = ssub.s32 %s19, 1
    %s25 = ssub.s32 %s19, 2
    %s26 = sadd.s32 %s19, 1
    %s27 = ssub.s32 %s19, %s26
    %p28 = scmp.eq.s32.totalorder %s27, 0
    %s30 = sadd.s32 %s29, 1
    %s31 = scalar_select %p28, %s29, %s30
    %p34 = pneg %p28
    %p35 = scmp.eq.s32.totalorder %s19, 1
    %p36 = por %p34, %p35
    %p37 = scmp.ne.s32.totalorder %s29, %s32
    %p38 = scmp.eq.s32.totalorder %s19, 0
    %p39 = por %p37, %p38
    %p40 = scmp.ne.s32.totalorder %s29, %s32
    %p41 = scmp.eq.s32.totalorder %s24, 1
    %p42 = por %p40, %p41
    %p43 = scmp.ne.s32.totalorder %s32, %s33
    %p44 = scmp.eq.s32.totalorder %s24, 0
    %p45 = por %p43, %p44
    %p46 = scmp.ne.s32.totalorder %s32, %s33
    %p47 = scmp.eq.s32.totalorder %s25, 1
    %p48 = por %p46, %p47
    %p50 = scmp.ne.s32.totalorder %s33, %s49
    %p51 = scmp.eq.s32.totalorder %s25, 0
    %p52 = por %p50, %p51
    %s54 = sadd.s32 %s53, 1
    %p57 = scmp.eq.s32.totalorder %s19, 1
    %p58 = scmp.ne.s32.totalorder %s53, %s55
    %p59 = scmp.eq.s32.totalorder %s19, 0
    %p60 = por %p58, %p59
    %p61 = scmp.ne.s32.totalorder %s53, %s55
    %p62 = scmp.eq.s32.totalorder %s24, 1
    %p63 = por %p61, %p62
    %p64 = scmp.ne.s32.totalorder %s55, %s56
    %p65 = scmp.eq.s32.totalorder %s24, 0
    %p66 = por %p64, %p65
    %p67 = scmp.ne.s32.totalorder %s55, %s56
    %p68 = scmp.eq.s32.totalorder %s25, 1
    %p69 = por %p67, %p68
    %p71 = scmp.ne.s32.totalorder %s56, %s70
    %p72 = scmp.eq.s32.totalorder %s25, 0
    %p73 = por %p71, %p72
    %s75 = sadd.s32 %s74, 1
    %p78 = scmp.eq.s32.totalorder %s19, 1
    %p79 = scmp.ne.s32.totalorder %s74, %s76
    %p80 = scmp.eq.s32.totalorder %s19, 0
    %p81 = por %p79, %p80
    %p82 = scmp.ne.s32.totalorder %s74, %s76
    %p83 = scmp.eq.s32.totalorder %s24, 1
    %p84 = por %p82, %p83
    %p85 = scmp.ne.s32.totalorder %s76, %s77
    %p86 = scmp.eq.s32.totalorder %s24, 0
    %p87 = por %p85, %p86
    %p88 = scmp.ne.s32.totalorder %s76, %s77
    %p89 = scmp.eq.s32.totalorder %s25, 1
    %p90 = por %p88, %p89
    %p92 = scmp.ne.s32.totalorder %s77, %s91
    %p93 = scmp.eq.s32.totalorder %s25, 0
    %p94 = por %p92, %p93
    %s96 = sadd.s32 %s95, 1
    %p99 = scmp.eq.s32.totalorder %s19, 1
    %p100 = scmp.ne.s32.totalorder %s95, %s97
    %p101 = scmp.eq.s32.totalorder %s19, 0
    %p102 = por %p100, %p101
    %p103 = scmp.ne.s32.totalorder %s95, %s97
    %p104 = scmp.eq.s32.totalorder %s24, 1
    %p105 = por %p103, %p104
    %p106 = scmp.ne.s32.totalorder %s97, %s98
    %p107 = scmp.eq.s32.totalorder %s24, 0
    %p108 = por %p106, %p107
    %p109 = scmp.ne.s32.totalorder %s97, %s98
    %p110 = scmp.eq.s32.totalorder %s25, 1
    %p111 = por %p109, %p110
    %p113 = scmp.ne.s32.totalorder %s98, %s112
    %p114 = scmp.eq.s32.totalorder %s25, 0
    %p115 = por %p113, %p114
    %s117 = sadd.s32 %s116, 1
    %p120 = scmp.eq.s32.totalorder %s19, 1
    %p121 = scmp.ne.s32.totalorder %s116, %s118
    %p122 = scmp.eq.s32.totalorder %s19, 0
    %p123 = por %p121, %p122
    %p124 = scmp.ne.s32.totalorder %s116, %s118
    %p125 = scmp.eq.s32.totalorder %s24, 1
    %p126 = por %p124, %p125
    %p127 = scmp.ne.s32.totalorder %s118, %s119
    %p128 = scmp.eq.s32.totalorder %s24, 0
    %p129 = por %p127, %p128
    %p130 = scmp.ne.s32.totalorder %s118, %s119
    %p131 = scmp.eq.s32.totalorder %s25, 1
    %p132 = por %p130, %p131
    %p134 = scmp.ne.s32.totalorder %s119, %s133
    %p135 = scmp.eq.s32.totalorder %s25, 0
    %p136 = por %p134, %p135
    %s138 = sadd.s32 %s137, 1
    %p141 = scmp.eq.s32.totalorder %s19, 1
    %p142 = scmp.ne.s32.totalorder %s137, %s139
    %p143 = scmp.eq.s32.totalorder %s19, 0
    %p144 = por %p142, %p143
    %p145 = scmp.ne.s32.totalorder %s137, %s139
    %p146 = scmp.eq.s32.totalorder %s24, 1
    %p147 = por %p145, %p146
    %p148 = scmp.ne.s32.totalorder %s139, %s140
    %p149 = scmp.eq.s32.totalorder %s24, 0
    %p150 = por %p148, %p149
    %p151 = scmp.ne.s32.totalorder %s139, %s140
    %p152 = scmp.eq.s32.totalorder %s25, 1
    %p153 = por %p151, %p152
    %p155 = scmp.ne.s32.totalorder %s140, %s154
    %p156 = scmp.eq.s32.totalorder %s25, 0
    %p157 = por %p155, %p156
    %s159 = sadd.s32 %s158, 1
    %p162 = scmp.eq.s32.totalorder %s19, 1
    %p163 = scmp.ne.s32.totalorder %s158, %s160
    %p164 = scmp.eq.s32.totalorder %s19, 0
    %p165 = por %p163, %p164
    %p166 = scmp.ne.s32.totalorder %s158, %s160
    %p167 = scmp.eq.s32.totalorder %s24, 1
    %p168 = por %p166, %p167
    %p169 = scmp.ne.s32.totalorder %s160, %s161
    %p170 = scmp.eq.s32.totalorder %s24, 0
    %p171 = por %p169, %p170
    %p172 = scmp.ne.s32.totalorder %s160, %s161
    %p173 = scmp.eq.s32.totalorder %s25, 1
    %p174 = por %p172, %p173
    %p176 = scmp.ne.s32.totalorder %s161, %s175
    %p177 = scmp.eq.s32.totalorder %s25, 0
    %p178 = por %p176, %p177
    %s180 = sadd.s32 %s179, 1
    %p183 = scmp.eq.s32.totalorder %s19, 1
    %p184 = scmp.ne.s32.totalorder %s179, %s181
    %p185 = scmp.eq.s32.totalorder %s19, 0
    %p186 = por %p184, %p185
    %p187 = scmp.ne.s32.totalorder %s179, %s181
    %p188 = scmp.eq.s32.totalorder %s24, 1
    %p189 = por %p187, %p188
    %p190 = scmp.ne.s32.totalorder %s181, %s182
    %p191 = scmp.eq.s32.totalorder %s24, 0
    %p192 = por %p190, %p191
    %p193 = scmp.ne.s32.totalorder %s181, %s182
    %p194 = scmp.eq.s32.totalorder %s25, 1
    %p195 = por %p193, %p194
    %p197 = scmp.ne.s32.totalorder %s182, %s196
    %p198 = scmp.eq.s32.totalorder %s25, 0
    %p199 = por %p197, %p198
    %s201 = sadd.s32 %s200, 1
    %p204 = scmp.eq.s32.totalorder %s19, 1
    %p205 = scmp.ne.s32.totalorder %s200, %s202
    %p206 = scmp.eq.s32.totalorder %s19, 0
    %p207 = por %p205, %p206
    %p208 = scmp.ne.s32.totalorder %s200, %s202
    %p209 = scmp.eq.s32.totalorder %s24, 1
    %p210 = por %p208, %p209
    %p211 = scmp.ne.s32.totalorder %s202, %s203
    %p212 = scmp.eq.s32.totalorder %s24, 0
    %p213 = por %p211, %p212
    %p214 = scmp.ne.s32.totalorder %s202, %s203
    %p215 = scmp.eq.s32.totalorder %s25, 1
    %p216 = por %p214, %p215
    %p218 = scmp.ne.s32.totalorder %s203, %s217
    %p219 = scmp.eq.s32.totalorder %s25, 0
    %p220 = por %p218, %p219
    %s222 = sadd.s32 %s221, 1
    %p225 = scmp.eq.s32.totalorder %s19, 1
    %p226 = scmp.ne.s32.totalorder %s221, %s223
    %p227 = scmp.eq.s32.totalorder %s19, 0
    %p228 = por %p226, %p227
    %p229 = scmp.ne.s32.totalorder %s221, %s223
    %p230 = scmp.eq.s32.totalorder %s24, 1
    %p231 = por %p229, %p230
    %p232 = scmp.ne.s32.totalorder %s223, %s224
    %p233 = scmp.eq.s32.totalorder %s24, 0
    %p234 = por %p232, %p233
    %p235 = scmp.ne.s32.totalorder %s223, %s224
    %p236 = scmp.eq.s32.totalorder %s25, 1
    %p237 = por %p235, %p236
    %p239 = scmp.ne.s32.totalorder %s224, %s238
    %p240 = scmp.eq.s32.totalorder %s25, 0
    %p241 = por %p239, %p240
    %s243 = sadd.s32 %s242, 1
    %p246 = scmp.eq.s32.totalorder %s19, 1
    %p247 = scmp.ne.s32.totalorder %s242, %s244
    %p248 = scmp.eq.s32.totalorder %s19, 0
    %p249 = por %p247, %p248
    %p250 = scmp.ne.s32.totalorder %s242, %s244
    %p251 = scmp.eq.s32.totalorder %s24, 1
    %p252 = por %p250, %p251
    %p253 = scmp.ne.s32.totalorder %s244, %s245
    %p254 = scmp.eq.s32.totalorder %s24, 0
    %p255 = por %p253, %p254
    %p256 = scmp.ne.s32.totalorder %s244, %s245
    %p257 = scmp.eq.s32.totalorder %s25, 1
    %p258 = por %p256, %p257
    %p260 = scmp.ne.s32.totalorder %s245, %s259
    %p261 = scmp.eq.s32.totalorder %s25, 0
    %p262 = por %p260, %p261
    %s263 = ssub.s32 %s19, %s26
    %p264 = scmp.eq.s32.totalorder %s263, 0
    %s266 = sadd.s32 %s265, 1
    %s267 = scalar_select %p264, %s265, %s266
    %p270 = pneg %p264
    %p271 = scmp.eq.s32.totalorder %s19, 1
    %p272 = por %p270, %p271
    %p273 = scmp.ne.s32.totalorder %s265, %s268
    %p274 = scmp.eq.s32.totalorder %s19, 0
    %p275 = por %p273, %p274
    %p276 = scmp.ne.s32.totalorder %s265, %s268
    %p277 = scmp.eq.s32.totalorder %s24, 1
    %p278 = por %p276, %p277
    %p279 = scmp.ne.s32.totalorder %s268, %s269
    %p280 = scmp.eq.s32.totalorder %s24, 0
    %p281 = por %p279, %p280
    %p282 = scmp.ne.s32.totalorder %s268, %s269
    %p283 = scmp.eq.s32.totalorder %s25, 1
    %p284 = por %p282, %p283
    %p286 = scmp.ne.s32.totalorder %s269, %s285
    %p287 = scmp.eq.s32.totalorder %s25, 0
    %p288 = por %p286, %p287
    %p289 = scmp.le.s32.totalorder 1, %s19
    %p290 = scmp.lt.s32.totalorder %s19, 3
    %p291 = pnand %p289, %p290
    %p292 = pneg %p291
    // Predicated region
    $region9: #{tpu_custom_call.1} parent=5 // pred_check
      _
    $region10: #{tpu_custom_call.1} parent=5 // pred_check_branch
      %294 = sbr.rel (%p291) target = $region12
    $region11: #{tpu_custom_call.1} parent=5 // pred_region
      %s295 = ssub.s32 %s19, 1
      // Predicated region
      $region13: #{tpu_custom_call.1} parent=11 // pred_check
        %p296 = pneg %p66
      $region14: #{tpu_custom_call.1} parent=11 // pred_check_branch
        %298 = sbr.rel (%p296) target = $region16
      $region15: #{tpu_custom_call.1} parent=11 // pred_region
        _
      $region16: #{tpu_custom_call.1} parent=11 // pred_fallthru
        _
      // Predicated region
      $region17: #{tpu_custom_call.1} parent=11 // pred_check
        %p299 = pneg %p87
      $region18: #{tpu_custom_call.1} parent=11 // pred_check_branch
        %301 = sbr.rel (%p299) target = $region20
      $region19: #{tpu_custom_call.1} parent=11 // pred_region
        _
      $region20: #{tpu_custom_call.1} parent=11 // pred_fallthru
        _
      // Predicated region
      $region21: #{tpu_custom_call.1} parent=11 // pred_check
        %p302 = pneg %p108
      $region22: #{tpu_custom_call.1} parent=11 // pred_check_branch
        %304 = sbr.rel (%p302) target = $region24
      $region23: #{tpu_custom_call.1} parent=11 // pred_region
        _
      $region24: #{tpu_custom_call.1} parent=11 // pred_fallthru
        _
      // Predicated region
      $region25: #{tpu_custom_call.1} parent=11 // pred_check
        %p305 = pneg %p129
      $region26: #{tpu_custom_call.1} parent=11 // pred_check_branch
        %307 = sbr.rel (%p305) target = $region28
      $region27: #{tpu_custom_call.1} parent=11 // pred_region
        _
      $region28: #{tpu_custom_call.1} parent=11 // pred_fallthru
        _
      // Predicated region
      $region29: #{tpu_custom_call.1} parent=11 // pred_check
        %p308 = pneg %p150
      $region30: #{tpu_custom_call.1} parent=11 // pred_check_branch
        %310 = sbr.rel (%p308) target = $region32
      $region31: #{tpu_custom_call.1} parent=11 // pred_region
        _
      $region32: #{tpu_custom_call.1} parent=11 // pred_fallthru
        _
      // Predicated region
      $region33: #{tpu_custom_call.1} parent=11 // pred_check
        %p311 = pneg %p171
      $region34: #{tpu_custom_call.1} parent=11 // pred_check_branch
        %313 = sbr.rel (%p311) target = $region36
      $region35: #{tpu_custom_call.1} parent=11 // pred_region
        _
      $region36: #{tpu_custom_call.1} parent=11 // pred_fallthru
        _
      // Predicated region
      $region37: #{tpu_custom_call.1} parent=11 // pred_check
        %p314 = pneg %p192
      $region38: #{tpu_custom_call.1} parent=11 // pred_check_branch
        %316 = sbr.rel (%p314) target = $region40
      $region39: #{tpu_custom_call.1} parent=11 // pred_region
        _
      $region40: #{tpu_custom_call.1} parent=11 // pred_fallthru
        _
      // Predicated region
      $region41: #{tpu_custom_call.1} parent=11 // pred_check
        %p317 = pneg %p213
      $region42: #{tpu_custom_call.1} parent=11 // pred_check_branch
        %319 = sbr.rel (%p317) target = $region44
      $region43: #{tpu_custom_call.1} parent=11 // pred_region
        _
      $region44: #{tpu_custom_call.1} parent=11 // pred_fallthru
        _
      // Predicated region
      $region45: #{tpu_custom_call.1} parent=11 // pred_check
        %p320 = pneg %p234
      $region46: #{tpu_custom_call.1} parent=11 // pred_check_branch
        %322 = sbr.rel (%p320) target = $region48
      $region47: #{tpu_custom_call.1} parent=11 // pred_region
        _
      $region48: #{tpu_custom_call.1} parent=11 // pred_fallthru
        _
      // Predicated region
      $region49: #{tpu_custom_call.1} parent=11 // pred_check
        %p323 = pneg %p255
      $region50: #{tpu_custom_call.1} parent=11 // pred_check_branch
        %325 = sbr.rel (%p323) target = $region52
      $region51: #{tpu_custom_call.1} parent=11 // pred_region
        _
      $region52: #{tpu_custom_call.1} parent=11 // pred_fallthru
        _
    $region12: #{tpu_custom_call.1} parent=5 // pred_fallthru
      _
    %p326 = scmp.lt.s32.totalorder %s19, 2
    // Predicated region
    $region53: #{tpu_custom_call.1} parent=5 // pred_check
      %p327 = pneg %p326
    $region54: #{tpu_custom_call.1} parent=5 // pred_check_branch
      %329 = sbr.rel (%p327) target = $region56
    $region55: #{tpu_custom_call.1} parent=5 // pred_region
      // Predicated region
      $region57: #{tpu_custom_call.1} parent=55 // pred_check
        %p330 = pneg %p39
      $region58: #{tpu_custom_call.1} parent=55 // pred_check_branch
        %332 = sbr.rel (%p330) target = $region60
      $region59: #{tpu_custom_call.1} parent=55 // pred_region
        %p333 = scmp.lt.s32.totalorder %s19, 1
        %s334 = scalar_select %p333, %s19, 1
        %s335 = smul.addr %s334, 8
        %s336 = smul.addr %s335, 8
        %s337 = scalar_lea.vmem %s0, %s336
      $region60: #{tpu_custom_call.1} parent=55 // pred_fallthru
        _
    $region56: #{tpu_custom_call.1} parent=5 // pred_fallthru
      _
    %p338 = scmp.le.s32.totalorder 1, %s19
    %p339 = scmp.lt.s32.totalorder %s19, 3
    %p340 = pnand %p338, %p339
    %p341 = pneg %p340
    // Predicated region
    $region61: #{tpu_custom_call.1} parent=5 // pred_check
      _
    $region62: #{tpu_custom_call.1} parent=5 // pred_check_branch
      %343 = sbr.rel (%p340) target = $region64
    $region63: #{tpu_custom_call.1} parent=5 // pred_region
      %s344 = ssub.s32 %s19, 1
      %p345 = scmp.lt.s32.totalorder %s24, 1
      %s346 = scalar_select %p345, %s24, 1
      %s347 = smul.addr %s346, 8
      %s348 = smul.addr %s347, 8
      %s349 = scalar_lea.vmem %s0, %s348
      %p350 = pneg %p45
      %p351 = pneg %p42
      %p352 = pneg %p66
      %p353 = pneg %p63
      %p354 = pneg %p87
      %p355 = pneg %p84
      %p356 = pneg %p108
      %p357 = pneg %p105
      %p358 = pneg %p129
      %p359 = pneg %p126
      %p360 = pneg %p150
      %p361 = pneg %p147
      %p362 = pneg %p171
      %p363 = pneg %p168
      %p364 = pneg %p192
      %p365 = pneg %p189
      %p366 = pneg %p213
      %p367 = pneg %p210
      %p368 = pneg %p234
      %p369 = pneg %p231
      %p370 = pneg %p255
      %p371 = pneg %p252
      %p372 = pneg %p281
      %p373 = pneg %p278
      %p374 = scmp.lt.s32.totalorder %s24, 1
      %s375 = scalar_select %p374, %s24, 1
      %s376 = scalar_lea.vmem %s11, %s375
      %p377 = scmp.lt.s32.totalorder %s24, 1
      %s378 = scalar_select %p377, %s24, 1
      %s379 = smul.addr %s378, 8
      %s380 = smul.addr %s379, 8
      %s381 = scalar_lea.vmem %s0, %s380
      %p382 = scmp.lt.s32.totalorder %s24, 1
      %s383 = scalar_select %p382, %s24, 1
      %s384 = scalar_lea.vmem %s11, %s383
      %v385 = vld [vmem:[%s381] sm:$0xff]
      %v386 = vld [vmem:[%s381 + $0x8] sm:$0xff]
      %v387 = vld [vmem:[%s381 + $0x10] sm:$0xff]
      %v388 = vld [vmem:[%s381 + $0x18] sm:$0xff]
      %v389 = vld [vmem:[%s381 + $0x20] sm:$0xff]
      %v390 = vld [vmem:[%s381 + $0x28] sm:$0xff]
      %v391 = vld [vmem:[%s381 + $0x30] sm:$0xff]
      %v392 = vld [vmem:[%s381 + $0x38] sm:$0xff]
      %vm401 = vcmask 1046528
      %v402 = vrot.slane %v385, 1
      %v403 = vrot.slane %v386, 1
      %v404 = vsel %vm401, %v402, %v403
      %v405 = vrot.slane %v387, 1
      %v406 = vsel %vm401, %v403, %v405
      %v407 = vrot.slane %v388, 1
      %v408 = vsel %vm401, %v405, %v407
      %v409 = vrot.slane %v389, 1
      %v410 = vsel %vm401, %v407, %v409
      %v411 = vrot.slane %v390, 1
      %v412 = vsel %vm401, %v409, %v411
      %v413 = vrot.slane %v391, 1
      %v414 = vsel %vm401, %v411, %v413
      %v415 = vrot.slane %v392, 1
      %v416 = vsel %vm401, %v413, %v415
      %417 = vrot.lane.b32.xlu0 %v404, 32
      %v418 = vpop.permute.xlu0 %417
      %419 = vrot.lane.b32.xlu0 %v406, 32
      %v420 = vpop.permute.xlu0 %419
      %421 = vrot.lane.b32.xlu0 %v408, 32
      %v422 = vpop.permute.xlu0 %421
      %423 = vrot.lane.b32.xlu0 %v410, 32
      %v424 = vpop.permute.xlu0 %423
      %425 = vrot.lane.b32.xlu0 %v412, 32
      %v426 = vpop.permute.xlu0 %425
      %427 = vrot.lane.b32.xlu0 %v414, 32
      %v428 = vpop.permute.xlu0 %427
      %429 = vrot.lane.b32.xlu0 %v416, 32
      %v430 = vpop.permute.xlu0 %429
      %431 = vrot.lane.b32.xlu0 %v415, 32
      %v432 = vpop.permute.xlu0 %431
      %vm441 = vcmask 1045504
      %v442 = vrot.slane %v385, 2
      %v443 = vrot.slane %v386, 2
      %v444 = vsel %vm441, %v442, %v443
      %v445 = vrot.slane %v387, 2
      %v446 = vsel %vm441, %v443, %v445
      %v447 = vrot.slane %v388, 2
      %v448 = vsel %vm441, %v445, %v447
      %v449 = vrot.slane %v389, 2
      %v450 = vsel %vm441, %v447, %v449
      %v451 = vrot.slane %v390, 2
      %v452 = vsel %vm441, %v449, %v451
      %v453 = vrot.slane %v391, 2
      %v454 = vsel %vm441, %v451, %v453
      %v455 = vrot.slane %v392, 2
      %v456 = vsel %vm441, %v453, %v455
      %457 = vrot.lane.b32.xlu0 %v444, 64
      %v458 = vpop.permute.xlu0 %457
      %459 = vrot.lane.b32.xlu0 %v446, 64
      %v460 = vpop.permute.xlu0 %459
      %461 = vrot.lane.b32.xlu0 %v448, 64
      %v462 = vpop.permute.xlu0 %461
      %463 = vrot.lane.b32.xlu0 %v450, 64
      %v464 = vpop.permute.xlu0 %463
      %465 = vrot.lane.b32.xlu0 %v452, 64
      %v466 = vpop.permute.xlu0 %465
      %467 = vrot.lane.b32.xlu0 %v454, 64
      %v468 = vpop.permute.xlu0 %467
      %469 = vrot.lane.b32.xlu0 %v456, 64
      %v470 = vpop.permute.xlu0 %469
      %471 = vrot.lane.b32.xlu0 %v455, 64
      %v472 = vpop.permute.xlu0 %471
      %vm481 = vcmask 1044480
      %v482 = vrot.slane %v385, 3
      %v483 = vrot.slane %v386, 3
      %v484 = vsel %vm481, %v482, %v483
      %v485 = vrot.slane %v387, 3
      %v486 = vsel %vm481, %v483, %v485
      %v487 = vrot.slane %v388, 3
      %v488 = vsel %vm481, %v485, %v487
      %v489 = vrot.slane %v389, 3
      %v490 = vsel %vm481, %v487, %v489
      %v491 = vrot.slane %v390, 3
      %v492 = vsel %vm481, %v489, %v491
      %v493 = vrot.slane %v391, 3
      %v494 = vsel %vm481, %v491, %v493
      %v495 = vrot.slane %v392, 3
      %v496 = vsel %vm481, %v493, %v495
      %497 = vrot.lane.b32.xlu0 %v484, 96
      %v498 = vpop.permute.xlu0 %497
      %499 = vrot.lane.b32.xlu0 %v486, 96
      %v500 = vpop.permute.xlu0 %499
      %501 = vrot.lane.b32.xlu0 %v488, 96
      %v502 = vpop.permute.xlu0 %501
      %503 = vrot.lane.b32.xlu0 %v490, 96
      %v504 = vpop.permute.xlu0 %503
      %505 = vrot.lane.b32.xlu0 %v492, 96
      %v506 = vpop.permute.xlu0 %505
      %507 = vrot.lane.b32.xlu0 %v494, 96
      %v508 = vpop.permute.xlu0 %507
      %509 = vrot.lane.b32.xlu0 %v496, 96
      %v510 = vpop.permute.xlu0 %509
      %511 = vrot.lane.b32.xlu0 %v495, 96
      %v512 = vpop.permute.xlu0 %511
      %vm521 = vcmask 1043456
      %v522 = vrot.slane %v385, 4
      %v523 = vrot.slane %v386, 4
      %v524 = vsel %vm521, %v522, %v523
      %v525 = vrot.slane %v387, 4
      %v526 = vsel %vm521, %v523, %v525
      %v527 = vrot.slane %v388, 4
      %v528 = vsel %vm521, %v525, %v527
      %v529 = vrot.slane %v389, 4
      %v530 = vsel %vm521, %v527, %v529
      %v531 = vrot.slane %v390, 4
      %v532 = vsel %vm521, %v529, %v531
      %v533 = vrot.slane %v391, 4
      %v534 = vsel %vm521, %v531, %v533
      %v535 = vrot.slane %v392, 4
      %v536 = vsel %vm521, %v533, %v535
      %vm545 = vcmask 1042432
      %v546 = vrot.slane %v385, 5
      %v547 = vrot.slane %v386, 5
      %v548 = vsel %vm545, %v546, %v547
      %v549 = vrot.slane %v387, 5
      %v550 = vsel %vm545, %v547, %v549
      %v551 = vrot.slane %v388, 5
      %v552 = vsel %vm545, %v549, %v551
      %v553 = vrot.slane %v389, 5
      %v554 = vsel %vm545, %v551, %v553
      %v555 = vrot.slane %v390, 5
      %v556 = vsel %vm545, %v553, %v555
      %v557 = vrot.slane %v391, 5
      %v558 = vsel %vm545, %v555, %v557
      %v559 = vrot.slane %v392, 5
      %v560 = vsel %vm545, %v557, %v559
      %561 = vrot.lane.b32.xlu0 %v548, 32
      %v562 = vpop.permute.xlu0 %561
      %563 = vrot.lane.b32.xlu0 %v550, 32
      %v564 = vpop.permute.xlu0 %563
      %565 = vrot.lane.b32.xlu0 %v552, 32
      %v566 = vpop.permute.xlu0 %565
      %567 = vrot.lane.b32.xlu0 %v554, 32
      %v568 = vpop.permute.xlu0 %567
      %569 = vrot.lane.b32.xlu0 %v556, 32
      %v570 = vpop.permute.xlu0 %569
      %571 = vrot.lane.b32.xlu0 %v558, 32
      %v572 = vpop.permute.xlu0 %571
      %573 = vrot.lane.b32.xlu0 %v560, 32
      %v574 = vpop.permute.xlu0 %573
      %575 = vrot.lane.b32.xlu0 %v559, 32
      %v576 = vpop.permute.xlu0 %575
      %vm585 = vcmask 1041408
      %v586 = vrot.slane %v385, 6
      %v587 = vrot.slane %v386, 6
      %v588 = vsel %vm585, %v586, %v587
      %v589 = vrot.slane %v387, 6
      %v590 = vsel %vm585, %v587, %v589
      %v591 = vrot.slane %v388, 6
      %v592 = vsel %vm585, %v589, %v591
      %v593 = vrot.slane %v389, 6
      %v594 = vsel %vm585, %v591, %v593
      %v595 = vrot.slane %v390, 6
      %v596 = vsel %vm585, %v593, %v595
      %v597 = vrot.slane %v391, 6
      %v598 = vsel %vm585, %v595, %v597
      %v599 = vrot.slane %v392, 6
      %v600 = vsel %vm585, %v597, %v599
      %601 = vrot.lane.b32.xlu0 %v588, 64
      %v602 = vpop.permute.xlu0 %601
      %603 = vrot.lane.b32.xlu0 %v590, 64
      %v604 = vpop.permute.xlu0 %603
      %605 = vrot.lane.b32.xlu0 %v592, 64
      %v606 = vpop.permute.xlu0 %605
      %607 = vrot.lane.b32.xlu0 %v594, 64
      %v608 = vpop.permute.xlu0 %607
      %609 = vrot.lane.b32.xlu0 %v596, 64
      %v610 = vpop.permute.xlu0 %609
      %611 = vrot.lane.b32.xlu0 %v598, 64
      %v612 = vpop.permute.xlu0 %611
      %613 = vrot.lane.b32.xlu0 %v600, 64
      %v614 = vpop.permute.xlu0 %613
      %615 = vrot.lane.b32.xlu0 %v599, 64
      %v616 = vpop.permute.xlu0 %615
      %vm625 = vcmask 1040384
      %v626 = vrot.slane %v385, 7
      %v627 = vrot.slane %v386, 7
      %v628 = vsel %vm625, %v626, %v627
      %v629 = vrot.slane %v387, 7
      %v630 = vsel %vm625, %v627, %v629
      %v631 = vrot.slane %v388, 7
      %v632 = vsel %vm625, %v629, %v631
      %v633 = vrot.slane %v389, 7
      %v634 = vsel %vm625, %v631, %v633
      %v635 = vrot.slane %v390, 7
      %v636 = vsel %vm625, %v633, %v635
      %v637 = vrot.slane %v391, 7
      %v638 = vsel %vm625, %v635, %v637
      %v639 = vrot.slane %v392, 7
      %v640 = vsel %vm625, %v637, %v639
      %641 = vrot.lane.b32.xlu0 %v628, 96
      %v642 = vpop.permute.xlu0 %641
      %643 = vrot.lane.b32.xlu0 %v630, 96
      %v644 = vpop.permute.xlu0 %643
      %645 = vrot.lane.b32.xlu0 %v632, 96
      %v646 = vpop.permute.xlu0 %645
      %647 = vrot.lane.b32.xlu0 %v634, 96
      %v648 = vpop.permute.xlu0 %647
      %649 = vrot.lane.b32.xlu0 %v636, 96
      %v650 = vpop.permute.xlu0 %649
      %651 = vrot.lane.b32.xlu0 %v638, 96
      %v652 = vpop.permute.xlu0 %651
      %653 = vrot.lane.b32.xlu0 %v640, 96
      %v654 = vpop.permute.xlu0 %653
      %655 = vrot.lane.b32.xlu0 %v639, 96
      %v656 = vpop.permute.xlu0 %655
      %vm665 = vcmask 261120
      %v666 = vsel %vm665, %v385, %v418
      %v667 = vsel %vm665, %v386, %v420
      %v668 = vsel %vm665, %v387, %v422
      %v669 = vsel %vm665, %v388, %v424
      %v670 = vsel %vm665, %v389, %v426
      %v671 = vsel %vm665, %v390, %v428
      %v672 = vsel %vm665, %v391, %v430
      %v673 = vsel %vm665, %v392, %v432
      %vm674 = vcmask 523264
      %v675 = vsel %vm674, %v666, %v458
      %v676 = vsel %vm674, %v667, %v460
      %v677 = vsel %vm674, %v668, %v462
      %v678 = vsel %vm674, %v669, %v464
      %v679 = vsel %vm674, %v670, %v466
      %v680 = vsel %vm674, %v671, %v468
      %v681 = vsel %vm674, %v672, %v470
      %v682 = vsel %vm674, %v673, %v472
      %vm683 = vcmask 785408
      %v684 = vsel %vm683, %v675, %v498
      %v685 = vsel %vm683, %v676, %v500
      %v686 = vsel %vm683, %v677, %v502
      %v687 = vsel %vm683, %v678, %v504
      %v688 = vsel %vm683, %v679, %v506
      %v689 = vsel %vm683, %v680, %v508
      %v690 = vsel %vm683, %v681, %v510
      %v691 = vsel %vm683, %v682, %v512
      %v692 = vsel %vm665, %v524, %v562
      %v693 = vsel %vm665, %v526, %v564
      %v694 = vsel %vm665, %v528, %v566
      %v695 = vsel %vm665, %v530, %v568
      %v696 = vsel %vm665, %v532, %v570
      %v697 = vsel %vm665, %v534, %v572
      %v698 = vsel %vm665, %v536, %v574
      %v699 = vsel %vm665, %v535, %v576
      %v700 = vsel %vm674, %v692, %v602
      %v701 = vsel %vm674, %v693, %v604
      %v702 = vsel %vm674, %v694, %v606
      %v703 = vsel %vm674, %v695, %v608
      %v704 = vsel %vm674, %v696, %v610
      %v705 = vsel %vm674, %v697, %v612
      %v706 = vsel %vm674, %v698, %v614
      %v707 = vsel %vm674, %v699, %v616
      %v708 = vsel %vm683, %v700, %v642
      %v709 = vsel %vm683, %v701, %v644
      %v710 = vsel %vm683, %v702, %v646
      %v711 = vsel %vm683, %v703, %v648
      %v712 = vsel %vm683, %v704, %v650
      %v713 = vsel %vm683, %v705, %v652
      %v714 = vsel %vm683, %v706, %v654
      %v715 = vsel %vm683, %v707, %v656
      %v716 = vld [vmem:[%s1] sm:$0xff]
      %v717 = vld [vmem:[%s1 + $0x8] sm:$0xff]
      %v718 = vld [vmem:[%s1 + $0x10] sm:$0xff]
      %v719 = vld [vmem:[%s1 + $0x18] sm:$0xff]
      %v720 = vld [vmem:[%s1 + $0x20] sm:$0xff]
      %v721 = vld [vmem:[%s1 + $0x28] sm:$0xff]
      %v722 = vld [vmem:[%s1 + $0x30] sm:$0xff]
      %v723 = vld [vmem:[%s1 + $0x38] sm:$0xff]
      %v724 = vld [vmem:[%s1 + $0x40] sm:$0xff]
      %v725 = vld [vmem:[%s1 + $0x48] sm:$0xff]
      %v726 = vld [vmem:[%s1 + $0x50] sm:$0xff]
      %v727 = vld [vmem:[%s1 + $0x58] sm:$0xff]
      %v728 = vld [vmem:[%s1 + $0x60] sm:$0xff]
      %v729 = vld [vmem:[%s1 + $0x68] sm:$0xff]
      %v730 = vld [vmem:[%s1 + $0x70] sm:$0xff]
      %v731 = vld [vmem:[%s1 + $0x78] sm:$0xff]
      %v732 = vld [vmem:[%s1 + $0x80] sm:$0xff]
      %v733 = vld [vmem:[%s1 + $0x88] sm:$0xff]
      %v734 = vld [vmem:[%s1 + $0x90] sm:$0xff]
      %v735 = vld [vmem:[%s1 + $0x98] sm:$0xff]
      %v736 = vld [vmem:[%s1 + $0xa0] sm:$0xff]
      %v737 = vld [vmem:[%s1 + $0xa8] sm:$0xff]
      %v738 = vld [vmem:[%s1 + $0xb0] sm:$0xff]
      %v739 = vld [vmem:[%s1 + $0xb8] sm:$0xff]
      %v740 = vld [vmem:[%s1 + $0xc0] sm:$0xff]
      %v741 = vld [vmem:[%s1 + $0xc8] sm:$0xff]
      %v742 = vld [vmem:[%s1 + $0xd0] sm:$0xff]
      %v743 = vld [vmem:[%s1 + $0xd8] sm:$0xff]
      %v744 = vld [vmem:[%s1 + $0xe0] sm:$0xff]
      %v745 = vld [vmem:[%s1 + $0xe8] sm:$0xff]
      %v746 = vld [vmem:[%s1 + $0xf0] sm:$0xff]
      %v747 = vld [vmem:[%s1 + $0xf8] sm:$0xff]
      %v748 = vld [vmem:[%s2] sm:$0x1]
      %v750 = vperm.slane %v748, 0
      %752 = vmatpush.msra.mxu0 %v731
      %753 = vmatpush.msra.mxu0 %v730
      %754 = vmatpush.msra.mxu0 %v729
      %755 = vmatpush.msra.mxu0 %v728
      %756 = vmatpush.msra.mxu0 %v727
      %757 = vmatpush.msra.mxu0 %v726
      %758 = vmatpush.msra.mxu0 %v725
      %759 = vmatpush.msra.mxu0 %v724
      %760 = vmatpush.msra.mxu0 %v723
      %761 = vmatpush.msra.mxu0 %v722
      %762 = vmatpush.msra.mxu0 %v721
      %763 = vmatpush.msra.mxu0 %v720
      %764 = vmatpush.msra.mxu0 %v719
      %765 = vmatpush.msra.mxu0 %v718
      %766 = vmatpush.msra.mxu0 %v717
      %767 = vmatpush.msra.mxu0 %v716
      %768 = vmatmul.f32.gmra.mxu0 %v684
      %v769 = vpop.f32.mrf.mxu0
      %v770 = vadd.f32 %v750, %v769
      %771 = vmatmul.f32.gmra.mxu0 %v685
      %v772 = vpop.f32.mrf.mxu0
      %v773 = vadd.f32 %v750, %v772
      %774 = vmatmul.f32.gmra.mxu0 %v686
      %v775 = vpop.f32.mrf.mxu0
      %v776 = vadd.f32 %v750, %v775
      %777 = vmatmul.f32.gmra.mxu0 %v687
      %v778 = vpop.f32.mrf.mxu0
      %v779 = vadd.f32 %v750, %v778
      %780 = vmatmul.f32.gmra.mxu0 %v688
      %v781 = vpop.f32.mrf.mxu0
      %v782 = vadd.f32 %v750, %v781
      %783 = vmatmul.f32.gmra.mxu0 %v689
      %v784 = vpop.f32.mrf.mxu0
      %v785 = vadd.f32 %v750, %v784
      %786 = vmatmul.f32.gmra.mxu0 %v690
      %v787 = vpop.f32.mrf.mxu0
      %v788 = vadd.f32 %v750, %v787
      %789 = vmatmul.f32.gmra.mxu0 %v691
      %v790 = vpop.f32.mrf.mxu0
      %v791 = vadd.f32 %v750, %v790
      %792 = vdwg.mxu0
      %793 = vmatpush.msra.mxu0 %v747
      %794 = vmatpush.msra.mxu0 %v746
      %795 = vmatpush.msra.mxu0 %v745
      %796 = vmatpush.msra.mxu0 %v744
      %797 = vmatpush.msra.mxu0 %v743
      %798 = vmatpush.msra.mxu0 %v742
      %799 = vmatpush.msra.mxu0 %v741
      %800 = vmatpush.msra.mxu0 %v740
      %801 = vmatpush.msra.mxu0 %v739
      %802 = vmatpush.msra.mxu0 %v738
      %803 = vmatpush.msra.mxu0 %v737
      %804 = vmatpush.msra.mxu0 %v736
      %805 = vmatpush.msra.mxu0 %v735
      %806 = vmatpush.msra.mxu0 %v734
      %807 = vmatpush.msra.mxu0 %v733
      %808 = vmatpush.msra.mxu0 %v732
      %809 = vmatmul.f32.gmra.mxu0 %v708
      %v810 = vpop.f32.mrf.mxu0
      %v811 = vadd.f32 %v770, %v810
      %812 = vmatmul.f32.gmra.mxu0 %v709
      %v813 = vpop.f32.mrf.mxu0
      %v814 = vadd.f32 %v773, %v813
      %815 = vmatmul.f32.gmra.mxu0 %v710
      %v816 = vpop.f32.mrf.mxu0
      %v817 = vadd.f32 %v776, %v816
      %818 = vmatmul.f32.gmra.mxu0 %v711
      %v819 = vpop.f32.mrf.mxu0
      %v820 = vadd.f32 %v779, %v819
      %821 = vmatmul.f32.gmra.mxu0 %v712
      %v822 = vpop.f32.mrf.mxu0
      %v823 = vadd.f32 %v782, %v822
      %824 = vmatmul.f32.gmra.mxu0 %v713
      %v825 = vpop.f32.mrf.mxu0
      %v826 = vadd.f32 %v785, %v825
      %827 = vmatmul.f32.gmra.mxu0 %v714
      %v828 = vpop.f32.mrf.mxu0
      %v829 = vadd.f32 %v788, %v828
      %830 = vmatmul.f32.gmra.mxu0 %v715
      %v831 = vpop.f32.mrf.mxu0
      %v832 = vadd.f32 %v791, %v831
      %833 = vdwg.mxu0
      %v834 = vmax.f32 %v811, 0.0
      %v835 = vmax.f32 %v814, 0.0
      %v836 = vmax.f32 %v817, 0.0
      %v837 = vmax.f32 %v820, 0.0
      %v838 = vmax.f32 %v823, 0.0
      %v839 = vmax.f32 %v826, 0.0
      %v840 = vmax.f32 %v829, 0.0
      %v841 = vmax.f32 %v832, 0.0
      %v842 = vlaneseq
      %v843 = vshrl.u32 %v842, 7
      %v844 = vadd.s32 %v843, 8
      %v845 = vadd.s32 %v843, 16
      %v846 = vadd.s32 %v843, 24
      %v847 = vlaneseq
      %v848 = vand.u32 %v847, 127
      %v849 = vmul.u32 %v843, 2
      %v850 = vmul.u32 %v844, 2
      %v851 = vmul.u32 %v845, 2
      %v852 = vmul.u32 %v846, 2
      %vm853 = vcmp.eq.s32.totalorder %v848, %v849
      %vm854 = vcmp.eq.s32.totalorder %v848, %v850
      %vm855 = vcmp.eq.s32.totalorder %v848, %v851
      %vm856 = vcmp.eq.s32.totalorder %v848, %v852
      %v857 = vsel %vm853, 1, 0
      %v858 = vsel %vm854, 1, 0
      %v859 = vsel %vm855, 1, 0
      %v860 = vsel %vm856, 1, 0
      %v861 = vcvt.s32.f32 %v857
      %v862 = vcvt.s32.f32 %v858
      %v863 = vcvt.s32.f32 %v859
      %v864 = vcvt.s32.f32 %v860
      %v865 = vadd.s32 %v849, 1
      %v866 = vadd.s32 %v850, 1
      %v867 = vadd.s32 %v851, 1
      %v868 = vadd.s32 %v852, 1
      %vm869 = vcmp.eq.s32.totalorder %v848, %v865
      %vm870 = vcmp.eq.s32.totalorder %v848, %v866
      %vm871 = vcmp.eq.s32.totalorder %v848, %v867
      %vm872 = vcmp.eq.s32.totalorder %v848, %v868
      %v873 = vsel %vm869, 1, 0
      %v874 = vsel %vm870, 1, 0
      %v875 = vsel %vm871, 1, 0
      %v876 = vsel %vm872, 1, 0
      %v877 = vcvt.s32.f32 %v873
      %v878 = vcvt.s32.f32 %v874
      %v879 = vcvt.s32.f32 %v875
      %v880 = vcvt.s32.f32 %v876
      %vm881 = vcmask 465920
      %v883 = vsel %vm881, %v861, 0
      %v886 = vsel %vm881, %v862, 0
      %v889 = vsel %vm881, %v863, 0
      %v892 = vsel %vm881, %v864, 0
      %v895 = vsel %vm625, %v841, 0
      %897 = vmatpush.msra.mxu0 0.0
      %898 = vmatpush.msra.mxu0 0.0
      %899 = vmatpush.msra.mxu0 0.0
      %900 = vmatpush.msra.mxu0 0.0
      %901 = vmatpush.msra.mxu0 0.0
      %902 = vmatpush.msra.mxu0 0.0
      %903 = vmatpush.msra.mxu0 0.0
      %904 = vmatpush.msra.mxu0 0.0
      %905 = vmatpush.msra.mxu0 %v895
      %906 = vmatpush.msra.mxu0 %v840
      %907 = vmatpush.msra.mxu0 %v839
      %908 = vmatpush.msra.mxu0 %v838
      %909 = vmatpush.msra.mxu0 %v837
      %910 = vmatpush.msra.mxu0 %v836
      %911 = vmatpush.msra.mxu0 %v835
      %912 = vmatpush.msra.mxu0 %v834
      %913 = vmatmul.f32.gmra.mxu0 %v883
      %v914 = vpop.f32.mrf.mxu0
      %v915 = vadd.f32 0.0, %v914
      %916 = vmatmul.f32.gmra.mxu0 %v886
      %v917 = vpop.f32.mrf.mxu0
      %v918 = vadd.f32 0.0, %v917
      %919 = vmatmul.f32.gmra.mxu0 %v889
      %v920 = vpop.f32.mrf.mxu0
      %v921 = vadd.f32 0.0, %v920
      %922 = vmatmul.f32.gmra.mxu0 %v892
      %v923 = vpop.f32.mrf.mxu0
      %v924 = vadd.f32 0.0, %v923
      %925 = vdwg.mxu0
      %v927 = vsel %vm881, %v877, 0
      %v930 = vsel %vm881, %v878, 0
      %v933 = vsel %vm881, %v879, 0
      %v936 = vsel %vm881, %v880, 0
      %938 = vmatpush.msra.mxu0 0.0
      %939 = vmatpush.msra.mxu0 0.0
      %940 = vmatpush.msra.mxu0 0.0
      %941 = vmatpush.msra.mxu0 0.0
      %942 = vmatpush.msra.mxu0 0.0
      %943 = vmatpush.msra.mxu0 0.0
      %944 = vmatpush.msra.mxu0 0.0
      %945 = vmatpush.msra.mxu0 0.0
      %946 = vmatpush.msra.mxu0 %v895
      %947 = vmatpush.msra.mxu0 %v840
      %948 = vmatpush.msra.mxu0 %v839
      %949 = vmatpush.msra.mxu0 %v838
      %950 = vmatpush.msra.mxu0 %v837
      %951 = vmatpush.msra.mxu0 %v836
      %952 = vmatpush.msra.mxu0 %v835
      %953 = vmatpush.msra.mxu0 %v834
      %954 = vmatmul.f32.gmra.mxu0 %v927
      %v955 = vpop.f32.mrf.mxu0
      %v956 = vadd.f32 0.0, %v955
      %957 = vmatmul.f32.gmra.mxu0 %v930
      %v958 = vpop.f32.mrf.mxu0
      %v959 = vadd.f32 0.0, %v958
      %960 = vmatmul.f32.gmra.mxu0 %v933
      %v961 = vpop.f32.mrf.mxu0
      %v962 = vadd.f32 0.0, %v961
      %963 = vmatmul.f32.gmra.mxu0 %v936
      %v964 = vpop.f32.mrf.mxu0
      %v965 = vadd.f32 0.0, %v964
      %966 = vdwg.mxu0
      %v967 = vmax.f32 %v915, %v956
      %v968 = vmax.f32 %v918, %v959
      %v969 = vmax.f32 %v921, %v962
      %v970 = vmax.f32 %v924, %v965
      %v974 = vrot.slane %v967, 1
      %v975 = vrot.slane %v968, 1
      %v976 = vsel %vm401, %v974, %v975
      %v977 = vrot.slane %v969, 1
      %v978 = vsel %vm401, %v975, %v977
      %979 = vrot.lane.b32.xlu0 %v976, 16
      %v980 = vpop.permute.xlu0 %979
      %981 = vrot.lane.b32.xlu0 %v978, 16
      %v982 = vpop.permute.xlu0 %981
      %983 = vrot.lane.b32.xlu0 %v977, 16
      %v984 = vpop.permute.xlu0 %983
      %v988 = vrot.slane %v967, 2
      %v989 = vrot.slane %v968, 2
      %v990 = vsel %vm441, %v988, %v989
      %v991 = vrot.slane %v969, 2
      %v992 = vsel %vm441, %v989, %v991
      %993 = vrot.lane.b32.xlu0 %v990, 32
      %v994 = vpop.permute.xlu0 %993
      %995 = vrot.lane.b32.xlu0 %v992, 32
      %v996 = vpop.permute.xlu0 %995
      %997 = vrot.lane.b32.xlu0 %v991, 32
      %v998 = vpop.permute.xlu0 %997
      %v1002 = vrot.slane %v967, 3
      %v1003 = vrot.slane %v968, 3
      %v1004 = vsel %vm481, %v1002, %v1003
      %v1005 = vrot.slane %v969, 3
      %v1006 = vsel %vm481, %v1003, %v1005
      %1007 = vrot.lane.b32.xlu0 %v1004, 48
      %v1008 = vpop.permute.xlu0 %1007
      %1009 = vrot.lane.b32.xlu0 %v1006, 48
      %v1010 = vpop.permute.xlu0 %1009
      %1011 = vrot.lane.b32.xlu0 %v1005, 48
      %v1012 = vpop.permute.xlu0 %1011
      %v1017 = vrot.slane %v967, 4
      %v1018 = vrot.slane %v968, 4
      %v1019 = vsel %vm521, %v1017, %v1018
      %v1020 = vrot.slane %v969, 4
      %v1021 = vsel %vm521, %v1018, %v1020
      %v1022 = vrot.slane %v970, 4
      %v1023 = vsel %vm521, %v1020, %v1022
      %1024 = vrot.lane.b32.xlu0 %v1019, 64
      %v1025 = vpop.permute.xlu0 %1024
      %1026 = vrot.lane.b32.xlu0 %v1021, 64
      %v1027 = vpop.permute.xlu0 %1026
      %1028 = vrot.lane.b32.xlu0 %v1023, 64
      %v1029 = vpop.permute.xlu0 %1028
      %v1033 = vrot.slane %v967, 5
      %v1034 = vrot.slane %v968, 5
      %v1035 = vsel %vm545, %v1033, %v1034
      %v1036 = vrot.slane %v969, 5
      %v1037 = vsel %vm545, %v1034, %v1036
      %v1038 = vrot.slane %v970, 5
      %v1039 = vsel %vm545, %v1036, %v1038
      %1040 = vrot.lane.b32.xlu0 %v1035, 80
      %v1041 = vpop.permute.xlu0 %1040
      %1042 = vrot.lane.b32.xlu0 %v1037, 80
      %v1043 = vpop.permute.xlu0 %1042
      %1044 = vrot.lane.b32.xlu0 %v1039, 80
      %v1045 = vpop.permute.xlu0 %1044
      %v1049 = vrot.slane %v967, 6
      %v1050 = vrot.slane %v968, 6
      %v1051 = vsel %vm585, %v1049, %v1050
      %v1052 = vrot.slane %v969, 6
      %v1053 = vsel %vm585, %v1050, %v1052
      %v1054 = vrot.slane %v970, 6
      %v1055 = vsel %vm585, %v1052, %v1054
      %1056 = vrot.lane.b32.xlu0 %v1051, 96
      %v1057 = vpop.permute.xlu0 %1056
      %1058 = vrot.lane.b32.xlu0 %v1053, 96
      %v1059 = vpop.permute.xlu0 %1058
      %1060 = vrot.lane.b32.xlu0 %v1055, 96
      %v1061 = vpop.permute.xlu0 %1060
      %v1065 = vrot.slane %v967, 7
      %v1066 = vrot.slane %v968, 7
      %v1067 = vsel %vm625, %v1065, %v1066
      %v1068 = vrot.slane %v969, 7
      %v1069 = vsel %vm625, %v1066, %v1068
      %v1070 = vrot.slane %v970, 7
      %v1071 = vsel %vm625, %v1068, %v1070
      %1072 = vrot.lane.b32.xlu0 %v1067, 112
      %v1073 = vpop.permute.xlu0 %1072
      %1074 = vrot.lane.b32.xlu0 %v1069, 112
      %v1075 = vpop.permute.xlu0 %1074
      %1076 = vrot.lane.b32.xlu0 %v1071, 112
      %v1077 = vpop.permute.xlu0 %1076
      %vm1081 = vcmask 130048
      %v1082 = vsel %vm1081, %v967, %v980
      %v1083 = vsel %vm1081, %v968, %v982
      %v1084 = vsel %vm1081, %v969, %v984
      %v1085 = vsel %vm665, %v1082, %v994
      %v1086 = vsel %vm665, %v1083, %v996
      %v1087 = vsel %vm665, %v1084, %v998
      %vm1088 = vcmask 392192
      %v1089 = vsel %vm1088, %v1085, %v1008
      %v1090 = vsel %vm1088, %v1086, %v1010
      %v1091 = vsel %vm1088, %v1087, %v1012
      %v1092 = vsel %vm674, %v1089, %v1025
      %v1093 = vsel %vm674, %v1090, %v1027
      %v1094 = vsel %vm674, %v1091, %v1029
      %vm1095 = vcmask 654336
      %v1096 = vsel %vm1095, %v1092, %v1041
      %v1097 = vsel %vm1095, %v1093, %v1043
      %v1098 = vsel %vm1095, %v1094, %v1045
      %v1099 = vsel %vm683, %v1096, %v1057
      %v1100 = vsel %vm683, %v1097, %v1059
      %v1101 = vsel %vm683, %v1098, %v1061
      %vm1102 = vcmask 916480
      %v1103 = vsel %vm1102, %v1099, %v1073
      %v1104 = vsel %vm1102, %v1100, %v1075
      %v1105 = vsel %vm1102, %v1101, %v1077
      %v1106 = vld [vmem:[%s3] sm:$0xff]
      %v1107 = vld [vmem:[%s3 + $0x8] sm:$0xff]
      %v1108 = vld [vmem:[%s3 + $0x10] sm:$0xff]
      %v1109 = vld [vmem:[%s3 + $0x18] sm:$0xff]
      %v1110 = vld [vmem:[%s3 + $0x20] sm:$0xff]
      %v1111 = vld [vmem:[%s3 + $0x28] sm:$0xff]
      %v1112 = vld [vmem:[%s3 + $0x30] sm:$0xff]
      %v1113 = vld [vmem:[%s3 + $0x38] sm:$0xff]
      %v1114 = vld [vmem:[%s3 + $0x40] sm:$0xff]
      %v1115 = vld [vmem:[%s3 + $0x48] sm:$0xff]
      %v1116 = vld [vmem:[%s3 + $0x50] sm:$0xff]
      %v1117 = vld [vmem:[%s3 + $0x58] sm:$0xff]
      %v1118 = vld [vmem:[%s3 + $0x60] sm:$0xff]
      %v1119 = vld [vmem:[%s3 + $0x68] sm:$0xff]
      %v1120 = vld [vmem:[%s3 + $0x70] sm:$0xff]
      %v1121 = vld [vmem:[%s3 + $0x78] sm:$0xff]
      %v1122 = vld [vmem:[%s4] sm:$0x1]
      %v1124 = vperm.slane %v1122, 0
      %1126 = vmatpush.msra.mxu0 %v1121
      %1127 = vmatpush.msra.mxu0 %v1120
      %1128 = vmatpush.msra.mxu0 %v1119
      %1129 = vmatpush.msra.mxu0 %v1118
      %1130 = vmatpush.msra.mxu0 %v1117
      %1131 = vmatpush.msra.mxu0 %v1116
      %1132 = vmatpush.msra.mxu0 %v1115
      %1133 = vmatpush.msra.mxu0 %v1114
      %1134 = vmatpush.msra.mxu0 %v1113
      %1135 = vmatpush.msra.mxu0 %v1112
      %1136 = vmatpush.msra.mxu0 %v1111
      %1137 = vmatpush.msra.mxu0 %v1110
      %1138 = vmatpush.msra.mxu0 %v1109
      %1139 = vmatpush.msra.mxu0 %v1108
      %1140 = vmatpush.msra.mxu0 %v1107
      %1141 = vmatpush.msra.mxu0 %v1106
      %1142 = vmatmul.f32.gmra.mxu0 %v1103
      %v1143 = vpop.f32.mrf.mxu0
      %v1144 = vadd.f32 %v1124, %v1143
      %1145 = vmatmul.f32.gmra.mxu0 %v1104
      %v1146 = vpop.f32.mrf.mxu0
      %v1147 = vadd.f32 %v1124, %v1146
      %1148 = vmatmul.f32.gmra.mxu0 %v1105
      %v1149 = vpop.f32.mrf.mxu0
      %v1150 = vadd.f32 %v1124, %v1149
      %1151 = vdwg.mxu0
      %vm1152 = vcmask 171008
      %v1153 = vsel %vm1152, %v861, 0
      %v1155 = vsel %vm1152, %v862, 0
      %v1158 = vsel %vm481, %v1150, 0
      %1160 = vmatpush.msra.mxu0 0.0
      %1161 = vmatpush.msra.mxu0 0.0
      %1162 = vmatpush.msra.mxu0 0.0
      %1163 = vmatpush.msra.mxu0 0.0
      %1164 = vmatpush.msra.mxu0 0.0
      %1165 = vmatpush.msra.mxu0 0.0
      %1166 = vmatpush.msra.mxu0 0.0
      %1167 = vmatpush.msra.mxu0 0.0
      %1168 = vmatpush.msra.mxu0 0.0
      %1169 = vmatpush.msra.mxu0 0.0
      %1170 = vmatpush.msra.mxu0 0.0
      %1171 = vmatpush.msra.mxu0 0.0
      %1172 = vmatpush.msra.mxu0 0.0
      %1173 = vmatpush.msra.mxu0 %v1158
      %1174 = vmatpush.msra.mxu0 %v1147
      %1175 = vmatpush.msra.mxu0 %v1144
      %1176 = vmatmul.f32.gmra.mxu0 %v1153
      %v1177 = vpop.f32.mrf.mxu0
      %v1178 = vadd.f32 0.0, %v1177
      %1179 = vmatmul.f32.gmra.mxu0 %v1155
      %v1180 = vpop.f32.mrf.mxu0
      %v1181 = vadd.f32 0.0, %v1180
      %1182 = vdwg.mxu0
      %v1183 = vsel %vm1152, %v877, 0
      %v1185 = vsel %vm1152, %v878, 0
      %1187 = vmatpush.msra.mxu0 0.0
      %1188 = vmatpush.msra.mxu0 0.0
      %1189 = vmatpush.msra.mxu0 0.0
      %1190 = vmatpush.msra.mxu0 0.0
      %1191 = vmatpush.msra.mxu0 0.0
      %1192 = vmatpush.msra.mxu0 0.0
      %1193 = vmatpush.msra.mxu0 0.0
      %1194 = vmatpush.msra.mxu0 0.0
      %1195 = vmatpush.msra.mxu0 0.0
      %1196 = vmatpush.msra.mxu0 0.0
      %1197 = vmatpush.msra.mxu0 0.0
      %1198 = vmatpush.msra.mxu0 0.0
      %1199 = vmatpush.msra.mxu0 0.0
      %1200 = vmatpush.msra.mxu0 %v1158
      %1201 = vmatpush.msra.mxu0 %v1147
      %1202 = vmatpush.msra.mxu0 %v1144
      %1203 = vmatmul.f32.gmra.mxu0 %v1183
      %v1204 = vpop.f32.mrf.mxu0
      %v1205 = vadd.f32 0.0, %v1204
      %1206 = vmatmul.f32.gmra.mxu0 %v1185
      %v1207 = vpop.f32.mrf.mxu0
      %v1208 = vadd.f32 0.0, %v1207
      %1209 = vdwg.mxu0
      %v1210 = vmax.f32 %v1178, %v1205
      %v1211 = vmax.f32 %v1181, %v1208
      %v1213 = vrot.slane %v1210, 1
      %1214 = vrot.lane.b32.xlu0 %v1213, 8
      %v1215 = vpop.permute.xlu0 %1214
      %v1217 = vrot.slane %v1210, 2
      %1218 = vrot.lane.b32.xlu0 %v1217, 16
      %v1219 = vpop.permute.xlu0 %1218
      %v1221 = vrot.slane %v1210, 3
      %1222 = vrot.lane.b32.xlu0 %v1221, 24
      %v1223 = vpop.permute.xlu0 %1222
      %v1225 = vrot.slane %v1210, 4
      %1226 = vrot.lane.b32.xlu0 %v1225, 32
      %v1227 = vpop.permute.xlu0 %1226
      %v1229 = vrot.slane %v1210, 5
      %1230 = vrot.lane.b32.xlu0 %v1229, 40
      %v1231 = vpop.permute.xlu0 %1230
      %v1234 = vrot.slane %v1210, 6
      %v1235 = vrot.slane %v1211, 6
      %v1236 = vsel %vm585, %v1234, %v1235
      %1237 = vrot.lane.b32.xlu0 %v1236, 48
      %v1238 = vpop.permute.xlu0 %1237
      %v1240 = vrot.slane %v1210, 7
      %v1241 = vrot.slane %v1211, 7
      %v1242 = vsel %vm625, %v1240, %v1241
      %1243 = vrot.lane.b32.xlu0 %v1242, 56
      %v1244 = vpop.permute.xlu0 %1243
      %vm1246 = vcmask 64512
      %v1247 = vsel %vm1246, %v1210, %v1215
      %v1248 = vsel %vm1081, %v1247, %v1219
      %vm1249 = vcmask 195584
      %v1250 = vsel %vm1249, %v1248, %v1223
      %v1251 = vsel %vm665, %v1250, %v1227
      %vm1252 = vcmask 326656
      %v1253 = vsel %vm1252, %v1251, %v1231
      %v1254 = vsel %vm1088, %v1253, %v1238
      %vm1255 = vcmask 457728
      %v1256 = vsel %vm1255, %v1254, %v1244
      %v1257 = vld [vmem:[%s5] sm:$0xff]
      %v1258 = vld [vmem:[%s5 + $0x8] sm:$0xff]
      %v1259 = vld [vmem:[%s5 + $0x10] sm:$0xff]
      %v1260 = vld [vmem:[%s5 + $0x18] sm:$0xff]
      %v1261 = vld [vmem:[%s5 + $0x20] sm:$0xff]
      %v1262 = vld [vmem:[%s5 + $0x28] sm:$0xff]
      %v1263 = vld [vmem:[%s5 + $0x30] sm:$0xff]
      %v1264 = vld [vmem:[%s5 + $0x38] sm:$0xff]
      %v1265 = vld [vmem:[%s6] sm:$0x1]
      %v1267 = vperm.slane %v1265, 0
      %v1270 = vsel %vm674, %v1256, 0
      %1272 = vmatpush.msra.mxu0 0.0
      %1273 = vmatpush.msra.mxu0 0.0
      %1274 = vmatpush.msra.mxu0 0.0
      %1275 = vmatpush.msra.mxu0 0.0
      %1276 = vmatpush.msra.mxu0 0.0
      %1277 = vmatpush.msra.mxu0 0.0
      %1278 = vmatpush.msra.mxu0 0.0
      %1279 = vmatpush.msra.mxu0 0.0
      %1280 = vmatpush.msra.mxu0 %v1264
      %1281 = vmatpush.msra.mxu0 %v1263
      %1282 = vmatpush.msra.mxu0 %v1262
      %1283 = vmatpush.msra.mxu0 %v1261
      %1284 = vmatpush.msra.mxu0 %v1260
      %1285 = vmatpush.msra.mxu0 %v1259
      %1286 = vmatpush.msra.mxu0 %v1258
      %1287 = vmatpush.msra.mxu0 %v1257
      %1288 = vmatmul.f32.gmra.mxu0 %v1270
      %v1289 = vpop.f32.mrf.mxu0
      %v1290 = vadd.f32 %v1267, %v1289
      %1291 = vdwg.mxu0
      %vm1292 = vcmask 23552
      %v1293 = vsel %vm1292, %v861, 0
      %v1296 = vsel %vm545, %v1290, 0
      %1298 = vmatpush.msra.mxu0 0.0
      %1299 = vmatpush.msra.mxu0 0.0
      %1300 = vmatpush.msra.mxu0 0.0
      %1301 = vmatpush.msra.mxu0 0.0
      %1302 = vmatpush.msra.mxu0 0.0
      %1303 = vmatpush.msra.mxu0 0.0
      %1304 = vmatpush.msra.mxu0 0.0
      %1305 = vmatpush.msra.mxu0 0.0
      %1306 = vmatpush.msra.mxu0 0.0
      %1307 = vmatpush.msra.mxu0 0.0
      %1308 = vmatpush.msra.mxu0 0.0
      %1309 = vmatpush.msra.mxu0 0.0
      %1310 = vmatpush.msra.mxu0 0.0
      %1311 = vmatpush.msra.mxu0 0.0
      %1312 = vmatpush.msra.mxu0 0.0
      %1313 = vmatpush.msra.mxu0 %v1296
      %1314 = vmatmul.f32.gmra.mxu0 %v1293
      %v1315 = vpop.f32.mrf.mxu0
      %v1316 = vadd.f32 0.0, %v1315
      %1317 = vdwg.mxu0
      %v1318 = vsel %vm1292, %v877, 0
      %1320 = vmatpush.msra.mxu0 0.0
      %1321 = vmatpush.msra.mxu0 0.0
      %1322 = vmatpush.msra.mxu0 0.0
      %1323 = vmatpush.msra.mxu0 0.0
      %1324 = vmatpush.msra.mxu0 0.0
      %1325 = vmatpush.msra.mxu0 0.0
      %1326 = vmatpush.msra.mxu0 0.0
      %1327 = vmatpush.msra.mxu0 0.0
      %1328 = vmatpush.msra.mxu0 0.0
      %1329 = vmatpush.msra.mxu0 0.0
      %1330 = vmatpush.msra.mxu0 0.0
      %1331 = vmatpush.msra.mxu0 0.0
      %1332 = vmatpush.msra.mxu0 0.0
      %1333 = vmatpush.msra.mxu0 0.0
      %1334 = vmatpush.msra.mxu0 0.0
      %1335 = vmatpush.msra.mxu0 %v1296
      %1336 = vmatmul.f32.gmra.mxu0 %v1318
      %v1337 = vpop.f32.mrf.mxu0
      %v1338 = vadd.f32 0.0, %v1337
      %1339 = vdwg.mxu0
      %v1340 = vmax.f32 %v1316, %v1338
      %v1341 = vld [vmem:[%s8] sm:$0xf]
      %v1342 = vld [vmem:[%s7] sm:$0xff]
      %v1343 = vld [vmem:[%s7 + $0x8] sm:$0xff]
      %1346 = vst [vmem:[#allocation1] ss:$2 sm:$0xff] %v1342
      %s1347 = scalar_lea.vmem [#allocation1], 16
      %1348 = vst [vmem:[%s1347] ss:$2 sm:$0xff] %v1343
      %v1349 = vld.sshfl [vmem:[#allocation1] sm:$0xff pattern:$0x75316420]
      %v1350 = vld.sshfl [vmem:[#allocation1 + $0x8] sm:$0xff pattern:$0x75316420]
      %v1351 = vld.sshfl [vmem:[#allocation1 + $0x10] sm:$0xff pattern:$0x75316420]
      %v1352 = vld.sshfl [vmem:[#allocation1 + $0x18] sm:$0xff pattern:$0x75316420]
      %vm1353 = vcmask 31744
      %v1355 = vsel %vm1353, %v1340, 0
      %v1357 = vsel %vm521, %v1349, 0
      %v1359 = vsel %vm521, %v1350, 0
      %v1361 = vsel %vm521, %v1351, 0
      %v1363 = vsel %vm521, %v1352, 0
      %1365 = vmatpush.msra.mxu0 0.0
      %1366 = vmatpush.msra.mxu0 0.0
      %1367 = vmatpush.msra.mxu0 0.0
      %1368 = vmatpush.msra.mxu0 0.0
      %1369 = vmatpush.msra.mxu0 0.0
      %1370 = vmatpush.msra.mxu0 0.0
      %1371 = vmatpush.msra.mxu0 0.0
      %1372 = vmatpush.msra.mxu0 0.0
      %1373 = vmatpush.msra.mxu0 0.0
      %1374 = vmatpush.msra.mxu0 0.0
      %1375 = vmatpush.msra.mxu0 0.0
      %1376 = vmatpush.msra.mxu0 0.0
      %1377 = vmatpush.msra.mxu0 0.0
      %1378 = vmatpush.msra.mxu0 0.0
      %1379 = vmatpush.msra.mxu0 0.0
      %1380 = vmatpush.msra.mxu0 %v1357
      %1381 = vmatmul.f32.gmra.mxu0 %v1355
      %v1382 = vpop.f32.mrf.mxu0
      %v1383 = vadd.f32 0.0, %v1382
      %1384 = vdwg.mxu0
      %1385 = vmatpush.msra.mxu0 0.0
      %1386 = vmatpush.msra.mxu0 0.0
      %1387 = vmatpush.msra.mxu0 0.0
      %1388 = vmatpush.msra.mxu0 0.0
      %1389 = vmatpush.msra.mxu0 0.0
      %1390 = vmatpush.msra.mxu0 0.0
      %1391 = vmatpush.msra.mxu0 0.0
      %1392 = vmatpush.msra.mxu0 0.0
      %1393 = vmatpush.msra.mxu0 0.0
      %1394 = vmatpush.msra.mxu0 0.0
      %1395 = vmatpush.msra.mxu0 0.0
      %1396 = vmatpush.msra.mxu0 0.0
      %1397 = vmatpush.msra.mxu0 0.0
      %1398 = vmatpush.msra.mxu0 0.0
      %1399 = vmatpush.msra.mxu0 0.0
      %1400 = vmatpush.msra.mxu0 %v1359
      %1401 = vmatmul.f32.gmra.mxu0 %v1355
      %v1402 = vpop.f32.mrf.mxu0
      %v1403 = vadd.f32 0.0, %v1402
      %1404 = vdwg.mxu0
      %1405 = vmatpush.msra.mxu0 0.0
      %1406 = vmatpush.msra.mxu0 0.0
      %1407 = vmatpush.msra.mxu0 0.0
      %1408 = vmatpush.msra.mxu0 0.0
      %1409 = vmatpush.msra.mxu0 0.0
      %1410 = vmatpush.msra.mxu0 0.0
      %1411 = vmatpush.msra.mxu0 0.0
      %1412 = vmatpush.msra.mxu0 0.0
      %1413 = vmatpush.msra.mxu0 0.0
      %1414 = vmatpush.msra.mxu0 0.0
      %1415 = vmatpush.msra.mxu0 0.0
      %1416 = vmatpush.msra.mxu0 0.0
      %1417 = vmatpush.msra.mxu0 0.0
      %1418 = vmatpush.msra.mxu0 0.0
      %1419 = vmatpush.msra.mxu0 0.0
      %1420 = vmatpush.msra.mxu0 %v1361
      %1421 = vmatmul.f32.gmra.mxu0 %v1355
      %v1422 = vpop.f32.mrf.mxu0
      %v1423 = vadd.f32 0.0, %v1422
      %1424 = vdwg.mxu0
      %1425 = vmatpush.msra.mxu0 0.0
      %1426 = vmatpush.msra.mxu0 0.0
      %1427 = vmatpush.msra.mxu0 0.0
      %1428 = vmatpush.msra.mxu0 0.0
      %1429 = vmatpush.msra.mxu0 0.0
      %1430 = vmatpush.msra.mxu0 0.0
      %1431 = vmatpush.msra.mxu0 0.0
      %1432 = vmatpush.msra.mxu0 0.0
      %1433 = vmatpush.msra.mxu0 0.0
      %1434 = vmatpush.msra.mxu0 0.0
      %1435 = vmatpush.msra.mxu0 0.0
      %1436 = vmatpush.msra.mxu0 0.0
      %1437 = vmatpush.msra.mxu0 0.0
      %1438 = vmatpush.msra.mxu0 0.0
      %1439 = vmatpush.msra.mxu0 0.0
      %1440 = vmatpush.msra.mxu0 %v1363
      %1441 = vmatmul.f32.gmra.mxu0 %v1355
      %v1442 = vpop.f32.mrf.mxu0
      %v1443 = vadd.f32 0.0, %v1442
      %1444 = vdwg.mxu0
      %v1449 = vrot.slane %v1403, 7
      %v1450 = vrot.slane %v1423, 6
      %v1451 = vrot.slane %v1443, 5
      %v1452 = vsel %vm625, %v1383, %v1449
      %vm1453 = vcmask 1042434
      %v1454 = vsel %vm1453, %v1450, %v1451
      %v1455 = vsel %vm585, %v1452, %v1454
      %v1457 = vadd.f32 %v1341, %v1455
      %v1458 = vld [vmem:[%s9] sm:$0xf]
      %v1459 = vmul.f32 %v1457, %v1458
      %v1461 = vperm.slane %v1459, 0
      %v1462 = vperm.slane %v1459, 1
      %v1463 = vperm.slane %v1459, 2
      %v1464 = vperm.slane %v1459, 3
      %v1469 = vsel %vm625, %v1461, 0.0
      %v1470 = vsel %vm625, %v1462, 0.0
      %v1471 = vadd.f32 %v1469, %v1470
      %v1472 = vsel %vm625, %v1463, 0.0
      %v1473 = vadd.f32 %v1471, %v1472
      %v1474 = vsel %vm625, %v1464, 0.0
      %v1475 = vadd.f32 %v1473, %v1474
      %1476 = vadd.xlane.f32.xlu0 %v1475
      %v1477 = vpop.xlane.xlu0 %1476
      %v1478 = vld [vmem:[#allocation2] sm:$0x1]
      %v1479 = vadd.f32 %v1477, %v1478
      %v1480 = vxor.u32 %v1479, 2147483648
      %v1481 = vmul.f32 %v1480, 1.442695
      %v1482 = vpow.pop %v1481
      %v1483 = vadd.f32 %v1482, 1.0
      %v1484 = vrcp.pop %v1483
      %v1485 = vmul.f32 %v1483, %v1484
      %v1486 = vsub.f32 1.0, %v1485
      %v1487 = vmul.f32 %v1484, %v1486
      %v1488 = vadd.f32 %v1484, %v1487
      %vm1489 = vweird.f32 %v1483
      %vm1490 = vweird.f32 %v1484
      %vm1491 = vmor %vm1489, %vm1490
      %v1492 = vsel %vm1491, %v1484, %v1488
      %v1493 = vand.u32 2147483647, %v1483
      %vm1494 = vcmp.eq.f32.partialorder %v1493, 8.507059e+37
      %v1495 = vand.u32 %v1483, 2147483648
      %v1496 = vor.u32 1.1754944e-38, %v1495
      %v1497 = vsel %vm1494, %v1496, %v1492
      %v1498 = vmul.f32 1.0, %v1497
      %vm1499 = vcmask 0
      %1500 = vst.msk [vmem:[%s384] sm:$0x1] %vm1499, %v1498
      %p1501 = scmp.lt.s32.totalorder %s24, 1
      %s1502 = scalar_select %p1501, %s24, 1
      %s1503 = scalar_lea.vmem %s11, %s1502
      // Predicated region
      $region65: #{tpu_custom_call.1} parent=63 // pred_check
        %p1504 = pneg %p278
      $region66: #{tpu_custom_call.1} parent=63 // pred_check_branch
        %1506 = sbr.rel (%p1504) target = $region68
      $region67: #{tpu_custom_call.1} parent=63 // pred_region
        _
      $region68: #{tpu_custom_call.1} parent=63 // pred_fallthru
        _
    $region64: #{tpu_custom_call.1} parent=5 // pred_fallthru
      _
    %p1507 = scmp.le.s32.totalorder 2, %s19
    // Predicated region
    $region69: #{tpu_custom_call.1} parent=5 // pred_check
      %p1508 = pneg %p1507
    $region70: #{tpu_custom_call.1} parent=5 // pred_check_branch
      %1510 = sbr.rel (%p1508) target = $region72
    $region71: #{tpu_custom_call.1} parent=5 // pred_region
      %s1511 = ssub.s32 %s19, 2
      // Predicated region
      $region73: #{tpu_custom_call.1} parent=71 // pred_check
        %p1512 = pneg %p284
      $region74: #{tpu_custom_call.1} parent=71 // pred_check_branch
        %1514 = sbr.rel (%p1512) target = $region76
      $region75: #{tpu_custom_call.1} parent=71 // pred_region
        %p1515 = scmp.lt.s32.totalorder %s25, 1
        %s1516 = scalar_select %p1515, %s25, 1
        %s1517 = scalar_lea.vmem %s11, %s1516
      $region76: #{tpu_custom_call.1} parent=71 // pred_fallthru
        _
    $region72: #{tpu_custom_call.1} parent=5 // pred_fallthru
      _
  $region6: #{tpu_custom_call.1} parent=0 // loop_footer
    %s23 = sadd.s32 1, %s19
  $region7: #{tpu_custom_call.1} parent=0 // loop_footer_branch
    %18 = sbr.rel target = $region3
  $region8: #{tpu_custom_call.1} parent=0 // loop_exit
    _

</llo_original>
